<compile_context>
chip_gen: v7x
topology: tpu7x:2x2x1
jax: 0.10.0
libtpu: 0.0.40
codegen_flags: <defaults>
</compile_context>

<pallas_src>
import functools

import numpy as np
import jax
import jax.numpy as jnp
from jax.experimental import pallas as pl
from jax.experimental.pallas import tpu as pltpu

LANE = 128
SUBLANE = 8
ROW_TILE = 512          # target row tile (flattened spatial) for both kernels


def _round_up(x, m):
    return (x + m - 1) // m * m


def _leaky(x, slope=0.1):
    return jnp.where(x > 0, x, slope * x)


def _tpu_tuning():
    """Return (mxu_width, vmem_limit_bytes) per TPU generation (safe fallback)."""
    kind = ""
    try:
        dev = jax.devices()[0]
        if dev.platform == "tpu":
            kind = dev.device_kind.lower()
    except Exception:
        pass
    if "v7" in kind:
        return 256, 48 * 2**20      # v7x: 64 MiB physical VMEM -> keep headroom
    if "v6" in kind or "trillium" in kind:
        return 256, 96 * 2**20      # v6e: 256-deep MXU, 128 MiB VMEM
    if "v5" in kind and ("lite" in kind or "5e" in kind):
        return 128, 96 * 2**20      # v5e: 128x128 MXU, 128 MiB VMEM
    return 128, 64 * 2**20          # unknown / v4 / v5p: conservative


# --------------------------------------------------------------------------
# Kernel 1: conv via per-tap accumulated MXU matmuls (+bias) + BN partial stats
# --------------------------------------------------------------------------
def _conv_stats_kernel(x_ref, w_ref, *rest, tap_offs, grp, tile_l,
                       has_bias, with_stats, with_mask):
    """One (image, co-tile, row-tile) grid step.

    x_ref : (Lin, Cp)                 bf16  flattened padded image (resident)
    w_ref : (n_grp, grp*Cp, tile_co)  bf16  tap-packed weights
    [b_ref]   : (1, tile_co)          f32   bias        (conv-only path)
    [mask_ref]: (tile_l, 1)           f32   stats mask  (BN path, if needed)
    y_ref : (tile_l, tile_co)               conv output tile (bf16 / f32)
    [stat_ref]: (2, tile_co)          f32   per-image (sum, sum^2) accumulator
    acc_ref   : (tile_l, tile_co)     f32   scratch accumulator
    """
    idx = 0
    b_ref = mask_ref = stat_ref = None
    if has_bias:
        b_ref = rest[idx]; idx += 1
    if with_mask:
        mask_ref = rest[idx]; idx += 1
    y_ref = rest[idx]; idx += 1
    if with_stats:
        stat_ref = rest[idx]; idx += 1
    acc_ref = rest[idx]

    l_idx = pl.program_id(2)
    base = l_idx * tile_l
    n_grp = len(tap_offs) // grp

    for g in range(n_grp):
        parts = [x_ref[pl.ds(base + tap_offs[g * grp + j], tile_l), :]
                 for j in range(grp)]
        # lane concat of full-128-lane pieces is layout free -> >=256-deep dot
        xg = parts[0] if grp == 1 else jnp.concatenate(parts, axis=-1)
        prod = jnp.dot(xg, w_ref[g], preferred_element_type=jnp.float32)
        if g == 0:
            acc_ref[...] = prod
        else:
            acc_ref[...] += prod

    a = acc_ref[...]
    if has_bias:
        a = a + b_ref[...]
    y_ref[...] = a.astype(y_ref.dtype)

    if with_stats:
        a_m = a * mask_ref[...] if with_mask else a
        s1 = jnp.sum(a_m, axis=0, keepdims=True)
        s2 = jnp.sum(a_m * a, axis=0, keepdims=True)
        st = jnp.concatenate([s1, s2], axis=0)        # (2, tile_co)

        @pl.when(l_idx == 0)
        def _():
            stat_ref[...] = st

        @pl.when(l_idx > 0)
        def _():
            stat_ref[...] += st


# --------------------------------------------------------------------------
# Kernel 2: fused BatchNorm apply (scale/shift) + LeakyReLU, row-tiled
# --------------------------------------------------------------------------
def _bn_act_kernel(y_ref, scale_ref, shift_ref, o_ref):
    y = y_ref[...].astype(jnp.float32)
    o_ref[...] = _leaky(y * scale_ref[...] + shift_ref[...])


# --------------------------------------------------------------------------
# Wrapper
# --------------------------------------------------------------------------
@functools.partial(jax.jit,
                   static_argnames=("kernel_size", "padding", "use_batch_norm", "eps"))
def cnn_block_forward(x_nchw, params, *, kernel_size=3, padding=None,
                      use_batch_norm=True, eps=1e-5):
    """PyTorch CNNBlock forward. NCHW in / NCHW out for PyTorch parity."""
    K = kernel_size
    pad = K // 2 if padding is None else padding

    N, Cin, H, W = x_nchw.shape
    Cout = params["w"].shape[0]
    Hp, Wp = H + 2 * pad, W + 2 * pad
    Ho, Wo = Hp - K + 1, Wp - K + 1

    mxu_w, vmem_limit = _tpu_tuning()
    Cop = _round_up(Cout, LANE)
    tile_co = 256 if (mxu_w >= 256 and Cop % 256 == 0) else LANE
    n_co = Cop // tile_co

    has_bias = not use_batch_norm
    with_stats = use_batch_norm
    y_dtype = jnp.bfloat16 if use_batch_norm else jnp.float32

    x_nhwc = jnp.transpose(x_nchw, (0, 2, 3, 1)).astype(jnp.float32)

    # ---- input / weight packing (plain JAX boundary glue) ----
    use_im2col = (K * K * Cin) <= LANE          # stem layers: fill the lanes
    if use_im2col:
        # Wrapper-side channel im2col: one tap, contraction = K*K*Cin (padded).
        row_w = Wo
        Cp = LANE
        x_sp = jnp.pad(x_nhwc, ((0, 0), (pad, pad), (pad, pad), (0, 0)))
        cols = [x_sp[:, dy:dy + Ho, dx:dx + Wo, :]
                for dy in range(K) for dx in range(K)]
        xcol = jnp.concatenate(cols, axis=-1).reshape(N, Ho * Wo, K * K * Cin)
        l_valid = Ho * Wo
        n_l = pl.cdiv(l_valid, ROW_TILE)
        tile_l = _round_up(pl.cdiv(l_valid, n_l), SUBLANE)
        lout_pad = n_l * tile_l
        xf = jnp.pad(xcol, ((0, 0), (0, lout_pad - l_valid),
                            (0, Cp - K * K * Cin))).astype(jnp.bfloat16)
        lin_pad = lout_pad

        w = jnp.transpose(params["w"], (2, 3, 1, 0)).reshape(K * K * Cin, Cout)
        w = jnp.pad(w, ((0, Cp - K * K * Cin), (0, Cop - Cout)))
        w = w.reshape(1, Cp, Cop).astype(jnp.bfloat16)
        tap_offs, grp = (0,), 1
    else:
        # Flattened padded-width layout: tap (dy,dx) is a row offset dy*Wp+dx.
        # Columns xx >= Wo of each row are garbage (masked out of the BN stats,
        # sliced away at the end).
        row_w = Wp
        Cp = _round_up(Cin, LANE)
        x_sp = jnp.pad(x_nhwc, ((0, 0), (pad, pad), (pad, pad), (0, Cp - Cin)))
        xf = x_sp.reshape(N, Hp * Wp, Cp)
        l_valid = Ho * Wp
        n_l = pl.cdiv(l_valid, ROW_TILE)
        tile_l = _round_up(pl.cdiv(l_valid, n_l), SUBLANE)
        lout_pad = n_l * tile_l
        lin_pad = _round_up(lout_pad + (K - 1) * Wp + (K - 1), SUBLANE)
        xf = jnp.pad(xf, ((0, 0), (0, lin_pad - Hp * Wp), (0, 0))).astype(jnp.bfloat16)

        w = jnp.transpose(params["w"], (2, 3, 1, 0))            # (K,K,Cin,Cout)
        w = jnp.pad(w, ((0, 0), (0, 0), (0, Cp - Cin), (0, Cop - Cout)))
        w = w.reshape(K * K, Cp, Cop)
        tap_offs = tuple(dy * Wp + dx for dy in range(K) for dx in range(K))
        grp = 2 if (mxu_w >= 256 and Cp == LANE and K * K > 1) else 1
        if grp == 2 and len(tap_offs) % 2 == 1:                 # pad with a zero tap
            w = jnp.concatenate([w, jnp.zeros((1, Cp, Cop), w.dtype)], axis=0)
            tap_offs = tap_offs + (0,)
        w = w.reshape(len(tap_offs) // grp, grp * Cp, Cop).astype(jnp.bfloat16)

    n_grp = len(tap_offs) // grp
    n_l = lout_pad // tile_l

    with_mask = with_stats and ((Wo < row_w) or (l_valid < lout_pad))

    # ---- grid order: keep the larger operand resident, stream the smaller ----
    img_bytes = lin_pad * Cp * 2
    w_tile_bytes = n_grp * grp * Cp * tile_co * 2
    weight_major = w_tile_bytes > img_bytes
    if weight_major:
        grid = (n_co, N, n_l)
        def _nc(a, b): return b, a          # (n, co)
    else:
        grid = (N, n_co, n_l)
        def _nc(a, b): return a, b

    def x_map(a, b, l): n, _ = _nc(a, b); return (n, 0, 0)
    def w_map(a, b, l): _, c = _nc(a, b); return (0, 0, c)
    def b_map(a, b, l): _, c = _nc(a, b); return (0, c)
    def m_map(a, b, l): return (l, 0)
    def y_map(a, b, l): n, c = _nc(a, b); return (n, l, c)
    def s_map(a, b, l): n, c = _nc(a, b); return (n, 0, c)

    in_specs = [pl.BlockSpec((None, lin_pad, Cp), x_map),
                pl.BlockSpec((n_grp, grp * Cp, tile_co), w_map)]
    operands = [xf, w]
    if has_bias:
        bias2d = jnp.pad(params["b"].astype(jnp.float32),
                         (0, Cop - Cout)).reshape(1, Cop)
        in_specs.append(pl.BlockSpec((1, tile_co), b_map))
        operands.append(bias2d)
    if with_mask:
        pidx = jnp.arange(lout_pad)
        mask2d = ((pidx % row_w < Wo) & (pidx < l_valid)).astype(jnp.float32)
        in_specs.append(pl.BlockSpec((tile_l, 1), m_map))
        operands.append(mask2d.reshape(lout_pad, 1))

    out_specs = [pl.BlockSpec((None, tile_l, tile_co), y_map)]
    out_shapes = [jax.ShapeDtypeStruct((N, lout_pad, Cop), y_dtype)]
    if with_stats:
        out_specs.append(pl.BlockSpec((None, 2, tile_co), s_map))
        out_shapes.append(jax.ShapeDtypeStruct((N, 2, Cop), jnp.float32))

    kernel = functools.partial(
        _conv_stats_kernel, tap_offs=tap_offs, grp=grp, tile_l=tile_l,
        has_bias=has_bias, with_stats=with_stats, with_mask=with_mask)

    res = pl.pallas_call(
        kernel,
        grid=grid,
        in_specs=in_specs,
        out_specs=tuple(out_specs),
        out_shape=tuple(out_shapes),
        scratch_shapes=[pltpu.VMEM((tile_l, tile_co), jnp.float32)],
        compiler_params=pltpu.CompilerParams(
            dimension_semantics=("parallel", "parallel", "arbitrary"),
            vmem_limit_bytes=vmem_limit),
    )(*operands)

    if with_stats:
        y3, stats = res
    else:
        y3, = res

    if not use_batch_norm:
        out3 = y3                                             # conv (+bias) only
    else:
        # Finalize BN statistics (tiny (C,) glue), fold into scale/shift.
        # NOTE: single-pass E[y^2]-E[y]^2 variance (f32 sums) -- can lose
        # precision vs PyTorch's two-pass variance when |mean| >> std.
        cnt = float(N * Ho * Wo)
        s = jnp.sum(stats, axis=0)                            # (2, Cop)
        mu = s[0] / cnt
        var = jnp.maximum(s[1] / cnt - mu * mu, 0.0)
        gamma = jnp.pad(params["gamma"].astype(jnp.float32), (0, Cop - Cout))
        beta = jnp.pad(params["beta"].astype(jnp.float32), (0, Cop - Cout))
        scale = gamma * jax.lax.rsqrt(var + eps)
        shift = beta - mu * scale

        out3 = pl.pallas_call(
            _bn_act_kernel,
            grid=(N, n_l),
            in_specs=[
                pl.BlockSpec((None, tile_l, Cop), lambda n, l: (n, l, 0)),
                pl.BlockSpec((1, Cop), lambda n, l: (0, 0)),
                pl.BlockSpec((1, Cop), lambda n, l: (0, 0)),
            ],
            out_specs=pl.BlockSpec((None, tile_l, Cop), lambda n, l: (n, l, 0)),
            out_shape=jax.ShapeDtypeStruct((N, lout_pad, Cop), jnp.float32),
            compiler_params=pltpu.CompilerParams(
                dimension_semantics=("parallel", "parallel"),
                vmem_limit_bytes=vmem_limit),
        )(y3, scale.reshape(1, Cop), shift.reshape(1, Cop))

    # Boundary glue only: drop padding, back to NCHW for PyTorch parity.
    out = out3[:, :Ho * row_w, :].reshape(N, Ho, row_w, Cop)
    out = out[:, :, :Wo, :Cout]
    return jnp.transpose(out, (0, 3, 1, 2)).astype(jnp.float32)


# --------------------------------------------------------------------------
# Pure-JAX reference (f32, HIGHEST precision) for correctness checking
# --------------------------------------------------------------------------
def reference_forward(x_nchw, params, *, kernel_size=3, padding=None,
                      use_batch_norm=True, eps=1e-5):
    K = kernel_size
    pad = K // 2 if padding is None else padding
    y = jax.lax.conv_general_dilated(
        x_nchw.astype(jnp.float32), params["w"].astype(jnp.float32),
        window_strides=(1, 1), padding=((pad, pad), (pad, pad)),
        dimension_numbers=("NCHW", "OIHW", "NCHW"),
        precision=jax.lax.Precision.HIGHEST)
    if not use_batch_norm:
        return y + params["b"][None, :, None, None]
    mu = jnp.mean(y, axis=(0, 2, 3), keepdims=True)
    var = jnp.mean((y - mu) ** 2, axis=(0, 2, 3), keepdims=True)
    yn = (y - mu) * jax.lax.rsqrt(var + eps) * params["gamma"][None, :, None, None] \
        + params["beta"][None, :, None, None]
    return _leaky(yn)


def init_params(key, cin, cout, k):
    k1, k2, k3, k4 = jax.random.split(key, 4)
    fan_in = cin * k * k
    return dict(
        w=jax.random.normal(k1, (cout, cin, k, k), jnp.float32) / np.sqrt(fan_in),
        b=0.1 * jax.random.normal(k2, (cout,), jnp.float32),
        gamma=1.0 + 0.1 * jax.random.normal(k3, (cout,), jnp.float32),
        beta=0.1 * jax.random.normal(k4, (cout,), jnp.float32),
    )


if __name__ == "__main__":
    key = jax.random.PRNGKey(0)
    kx, kp, kx2, kp2 = jax.random.split(key, 4)

    # 1) stem-like layer (tiny Cin -> wrapper-side K*K*Cin lane-packing path)
    N, Cin, H, W, Cout, K = 2, 4, 16, 16, 8, 3
    x = jax.random.normal(kx, (N, Cin, H, W), jnp.float32)        # NCHW, like PyTorch
    params = init_params(kp, Cin, Cout, K)

    out = jax.block_until_ready(
        cnn_block_forward(x, params, kernel_size=K, padding=1, use_batch_norm=True))
    ref = reference_forward(x, params, kernel_size=K, padding=1, use_batch_norm=True)
    assert out.shape == (N, Cout, H, W) and out.dtype == jnp.float32
    # tolerance covers bf16 MXU operands / bf16 intermediate vs f32 HIGHEST reference
    np.testing.assert_allclose(np.asarray(out), np.asarray(ref), rtol=2e-2, atol=4e-2)

    # conv-only path (bias=True, no BN, no activation)
    out_nb = jax.block_until_ready(
        cnn_block_forward(x, params, kernel_size=K, padding=1, use_batch_norm=False))
    ref_nb = reference_forward(x, params, kernel_size=K, padding=1, use_batch_norm=False)
    np.testing.assert_allclose(np.asarray(out_nb), np.asarray(ref_nb), rtol=2e-2, atol=3e-2)

    # 2) mid-network layer (Cin*K*K > 128 -> per-tap accumulated-matmul path)
    N2, Cin2, Cout2 = 2, 32, 16
    x2 = jax.random.normal(kx2, (N2, Cin2, H, W), jnp.float32)
    params2 = init_params(kp2, Cin2, Cout2, K)
    out2 = jax.block_until_ready(
        cnn_block_forward(x2, params2, kernel_size=K, padding=1, use_batch_norm=True))
    ref2 = reference_forward(x2, params2, kernel_size=K, padding=1, use_batch_norm=True)
    np.testing.assert_allclose(np.asarray(out2), np.asarray(ref2), rtol=2e-2, atol=4e-2)

    print("KERNEL_OK")
</pallas_src>

<mosaic_0001>
module attributes {stable_mosaic.version = 11 : i64} {
  func.func @_conv_stats_kernel(%arg0: i32, %arg1: i32, %arg2: i32, %arg3: memref<1x256x128xbf16, #tpu.memory_space<vmem>>, %arg4: memref<1x128x128xbf16, #tpu.memory_space<vmem>>, %arg5: memref<1x256x128xbf16, #tpu.memory_space<vmem>>, %arg6: memref<1x2x128xf32, #tpu.memory_space<vmem>>, %arg7: memref<256x128xf32, #tpu.memory_space<vmem>>) attributes {dimension_semantics = [#tpu.dimension_semantics<parallel>, #tpu.dimension_semantics<parallel>, #tpu.dimension_semantics<arbitrary>], iteration_bounds = array<i64: 2, 1, 1>, scalar_prefetch = 0 : i64, scratch_operands = 1 : i64, tpu.core_type = #tpu.core_type<tc>, window_params = [{transform_indices = @transform_0, window_bounds = array<i64: 1, 256, 128>}, {transform_indices = @transform_1, window_bounds = array<i64: 1, 128, 128>}, {transform_indices = @transform_2, window_bounds = array<i64: 1, 256, 128>}, {transform_indices = @transform_3, window_bounds = array<i64: 1, 2, 128>}]} {
    %c256_i32 = arith.constant 256 : i32
    %0 = arith.muli %arg2, %c256_i32 : i32
    %c0_i32 = arith.constant 0 : i32
    %1 = arith.addi %0, %c0_i32 : i32
    %c0 = arith.constant 0 : index
    %2 = arith.index_cast %1 : i32 to index
    %c0_0 = arith.constant 0 : index
    %3 = vector.load %arg3[%c0, %2, %c0_0] : memref<1x256x128xbf16, #tpu.memory_space<vmem>>, vector<1x256x128xbf16>
    %4 = vector.shape_cast %3 : vector<1x256x128xbf16> to vector<256x128xbf16>
    %c0_1 = arith.constant 0 : index
    %c0_2 = arith.constant 0 : index
    %c0_3 = arith.constant 0 : index
    %5 = vector.load %arg4[%c0_1, %c0_2, %c0_3] : memref<1x128x128xbf16, #tpu.memory_space<vmem>>, vector<1x128x128xbf16>
    %6 = vector.shape_cast %5 : vector<1x128x128xbf16> to vector<128x128xbf16>
    %cst = arith.constant dense<0.000000e+00> : vector<256x128xf32>
    %7 = tpu.matmul %4, %6, %cst {dimension_numbers = #tpu.dot_dimension_numbers<[1], [0], [0], [1], [0, 0, 1, 1], [], []>} : vector<256x128xbf16>, vector<128x128xbf16>, vector<256x128xf32> -> vector<256x128xf32>
    %c0_4 = arith.constant 0 : index
    %c0_5 = arith.constant 0 : index
    %8 = vector.load %arg7[%c0_4, %c0_5] : memref<256x128xf32, #tpu.memory_space<vmem>>, vector<256x128xf32>
    tpu.vector_store %arg7[%c0_4, %c0_5], %7 {strides = array<i32>} : memref<256x128xf32, #tpu.memory_space<vmem>>, vector<256x128xf32>,
    %c0_6 = arith.constant 0 : index
    %c0_7 = arith.constant 0 : index
    %9 = vector.load %arg7[%c0_6, %c0_7] : memref<256x128xf32, #tpu.memory_space<vmem>>, vector<256x128xf32>
    %10 = arith.truncf %9 : vector<256x128xf32> to vector<256x128xbf16>
    %c0_8 = arith.constant 0 : index
    %c0_9 = arith.constant 0 : index
    %c0_10 = arith.constant 0 : index
    %11 = vector.load %arg5[%c0_8, %c0_9, %c0_10] : memref<1x256x128xbf16, #tpu.memory_space<vmem>>, vector<1x256x128xbf16>
    %12 = vector.shape_cast %11 : vector<1x256x128xbf16> to vector<256x128xbf16>
    %13 = vector.shape_cast %10 : vector<256x128xbf16> to vector<1x256x128xbf16>
    tpu.vector_store %arg5[%c0_8, %c0_9, %c0_10], %13 {strides = array<i32>} : memref<1x256x128xbf16, #tpu.memory_space<vmem>>, vector<1x256x128xbf16>,
    %cst_11 = arith.constant dense<0.000000e+00> : vector<128xf32>
    %14 = vector.multi_reduction <add>, %9, %cst_11 [0] : vector<256x128xf32> to vector<128xf32>
    %15 = vector.shape_cast %14 : vector<128xf32> to vector<1x128xf32>
    %16 = arith.mulf %9, %9 : vector<256x128xf32>
    %cst_12 = arith.constant dense<0.000000e+00> : vector<128xf32>
    %17 = vector.multi_reduction <add>, %16, %cst_12 [0] : vector<256x128xf32> to vector<128xf32>
    %18 = vector.shape_cast %17 : vector<128xf32> to vector<1x128xf32>
    %19 = tpu.concatenate %15, %18 in 0 : vector<1x128xf32>, vector<1x128xf32> -> vector<2x128xf32>
    %c0_i32_13 = arith.constant 0 : i32
    %20 = arith.cmpi eq, %arg2, %c0_i32_13 : i32
    %21 = arith.extui %20 : i1 to i32
    %c0_i32_14 = arith.constant 0 : i32
    %22 = arith.cmpi ne, %21, %c0_i32_14 : i32
    scf.if %22 {
      %c0_17 = arith.constant 0 : index
      %c0_18 = arith.constant 0 : index
      %c0_19 = arith.constant 0 : index
      %26 = vector.load %arg6[%c0_17, %c0_18, %c0_19] : memref<1x2x128xf32, #tpu.memory_space<vmem>>, vector<1x2x128xf32>
      %27 = vector.shape_cast %26 : vector<1x2x128xf32> to vector<2x128xf32>
      %28 = vector.shape_cast %19 : vector<2x128xf32> to vector<1x2x128xf32>
      tpu.vector_store %arg6[%c0_17, %c0_18, %c0_19], %28 {strides = array<i32>} : memref<1x2x128xf32, #tpu.memory_space<vmem>>, vector<1x2x128xf32>,
    } else {
    }
    %c0_i32_15 = arith.constant 0 : i32
    %23 = arith.cmpi sgt, %arg2, %c0_i32_15 : i32
    %24 = arith.extui %23 : i1 to i32
    %c0_i32_16 = arith.constant 0 : i32
    %25 = arith.cmpi ne, %24, %c0_i32_16 : i32
    scf.if %25 {
      %c0_17 = arith.constant 0 : index
      %c0_18 = arith.constant 0 : index
      %c0_19 = arith.constant 0 : index
      %26 = vector.load %arg6[%c0_17, %c0_18, %c0_19] : memref<1x2x128xf32, #tpu.memory_space<vmem>>, vector<1x2x128xf32>
      %27 = vector.shape_cast %26 : vector<1x2x128xf32> to vector<2x128xf32>
      %28 = arith.addf %27, %19 : vector<2x128xf32>
      %c0_20 = arith.constant 0 : index
      %c0_21 = arith.constant 0 : index
      %c0_22 = arith.constant 0 : index
      %29 = vector.load %arg6[%c0_20, %c0_21, %c0_22] : memref<1x2x128xf32, #tpu.memory_space<vmem>>, vector<1x2x128xf32>
      %30 = vector.shape_cast %29 : vector<1x2x128xf32> to vector<2x128xf32>
      %31 = vector.shape_cast %28 : vector<2x128xf32> to vector<1x2x128xf32>
      tpu.vector_store %arg6[%c0_20, %c0_21, %c0_22], %31 {strides = array<i32>} : memref<1x2x128xf32, #tpu.memory_space<vmem>>, vector<1x2x128xf32>,
    } else {
    }
    return
  }
  func.func @transform_0(%arg0: i32, %arg1: i32, %arg2: i32) -> (i32, i32, i32) {
    %c0_i32 = arith.constant 0 : i32
    %c0_i32_0 = arith.constant 0 : i32
    %c0_i32_1 = arith.constant 0 : i32
    return %arg0, %c0_i32, %c0_i32_0 : i32, i32, i32
  }
  func.func @transform_1(%arg0: i32, %arg1: i32, %arg2: i32) -> (i32, i32, i32) {
    %c0_i32 = arith.constant 0 : i32
    %c0_i32_0 = arith.constant 0 : i32
    %c0_i32_1 = arith.constant 0 : i32
    return %c0_i32, %c0_i32_0, %arg1 : i32, i32, i32
  }
  func.func @transform_2(%arg0: i32, %arg1: i32, %arg2: i32) -> (i32, i32, i32) {
    %c0_i32 = arith.constant 0 : i32
    return %arg0, %arg2, %arg1 : i32, i32, i32
  }
  func.func @transform_3(%arg0: i32, %arg1: i32, %arg2: i32) -> (i32, i32, i32) {
    %c0_i32 = arith.constant 0 : i32
    %c0_i32_0 = arith.constant 0 : i32
    return %arg0, %c0_i32, %arg1 : i32, i32, i32
  }
}

module attributes {stable_mosaic.version = 11 : i64} {
  func.func @_bn_act_kernel(%arg0: i32, %arg1: i32, %arg2: memref<1x256x128xbf16, #tpu.memory_space<vmem>>, %arg3: memref<1x128xf32, #tpu.memory_space<vmem>>, %arg4: memref<1x128xf32, #tpu.memory_space<vmem>>, %arg5: memref<1x256x128xf32, #tpu.memory_space<vmem>>) attributes {dimension_semantics = [#tpu.dimension_semantics<parallel>, #tpu.dimension_semantics<parallel>], iteration_bounds = array<i64: 2, 1>, scalar_prefetch = 0 : i64, scratch_operands = 0 : i64, tpu.core_type = #tpu.core_type<tc>, window_params = [{transform_indices = @transform_0, window_bounds = array<i64: 1, 256, 128>}, {pipeline_mode = #tpu.pipeline_mode<synchronous>, transform_indices = @transform_1, window_bounds = array<i64: 1, 128>}, {pipeline_mode = #tpu.pipeline_mode<synchronous>, transform_indices = @transform_2, window_bounds = array<i64: 1, 128>}, {transform_indices = @transform_3, window_bounds = array<i64: 1, 256, 128>}]} {
    %c0 = arith.constant 0 : index
    %c0_0 = arith.constant 0 : index
    %c0_1 = arith.constant 0 : index
    %0 = vector.load %arg2[%c0, %c0_0, %c0_1] : memref<1x256x128xbf16, #tpu.memory_space<vmem>>, vector<1x256x128xbf16>
    %1 = vector.shape_cast %0 : vector<1x256x128xbf16> to vector<256x128xbf16>
    %2 = arith.extf %1 : vector<256x128xbf16> to vector<256x128xf32>
    %c0_2 = arith.constant 0 : index
    %c0_3 = arith.constant 0 : index
    %3 = vector.load %arg3[%c0_2, %c0_3] : memref<1x128xf32, #tpu.memory_space<vmem>>, vector<1x128xf32>
    %4 = vector.broadcast %3 : vector<1x128xf32> to vector<256x128xf32>
    %5 = arith.mulf %2, %4 : vector<256x128xf32>
    %c0_4 = arith.constant 0 : index
    %c0_5 = arith.constant 0 : index
    %6 = vector.load %arg4[%c0_4, %c0_5] : memref<1x128xf32, #tpu.memory_space<vmem>>, vector<1x128xf32>
    %7 = vector.broadcast %6 : vector<1x128xf32> to vector<256x128xf32>
    %8 = arith.addf %5, %7 : vector<256x128xf32>
    %cst = arith.constant 0.000000e+00 : f32
    %9 = vector.broadcast %cst : f32 to vector<256x128xf32>
    %10 = arith.cmpf ogt, %8, %9 : vector<256x128xf32>
    %cst_6 = arith.constant 1.000000e-01 : f32
    %11 = vector.broadcast %cst_6 : f32 to vector<256x128xf32>
    %12 = arith.mulf %11, %8 : vector<256x128xf32>
    %13 = arith.select %10, %8, %12 : vector<256x128xi1>, vector<256x128xf32>
    %c0_7 = arith.constant 0 : index
    %c0_8 = arith.constant 0 : index
    %c0_9 = arith.constant 0 : index
    %14 = vector.load %arg5[%c0_7, %c0_8, %c0_9] : memref<1x256x128xf32, #tpu.memory_space<vmem>>, vector<1x256x128xf32>
    %15 = vector.shape_cast %14 : vector<1x256x128xf32> to vector<256x128xf32>
    %16 = vector.shape_cast %13 : vector<256x128xf32> to vector<1x256x128xf32>
    tpu.vector_store %arg5[%c0_7, %c0_8, %c0_9], %16 {strides = array<i32>} : memref<1x256x128xf32, #tpu.memory_space<vmem>>, vector<1x256x128xf32>,
    return
  }
  func.func @transform_0(%arg0: i32, %arg1: i32) -> (i32, i32, i32) {
    %c0_i32 = arith.constant 0 : i32
    %c0_i32_0 = arith.constant 0 : i32
    return %arg0, %arg1, %c0_i32 : i32, i32, i32
  }
  func.func @transform_1(%arg0: i32, %arg1: i32) -> (i32, i32) {
    %c0_i32 = arith.constant 0 : i32
    %c0_i32_0 = arith.constant 0 : i32
    %c0_i32_1 = arith.constant 0 : i32
    return %c0_i32, %c0_i32_0 : i32, i32
  }
  func.func @transform_2(%arg0: i32, %arg1: i32) -> (i32, i32) {
    %c0_i32 = arith.constant 0 : i32
    %c0_i32_0 = arith.constant 0 : i32
    %c0_i32_1 = arith.constant 0 : i32
    return %c0_i32, %c0_i32_0 : i32, i32
  }
  func.func @transform_3(%arg0: i32, %arg1: i32) -> (i32, i32, i32) {
    %c0_i32 = arith.constant 0 : i32
    %c0_i32_0 = arith.constant 0 : i32
    return %arg0, %arg1, %c0_i32 : i32, i32, i32
  }
}

</mosaic_0001>

<llo_original>
// kernel: cnn_block_forward.3
$region0: #{cnn_block_forward.3}
  #allocation0 [shape = 'u32[]', space=smem, size = 0x4, offset = 0x4, fixed_abs, tag = 'smem constant byte address 0x4 - core index']
  #allocation1 [shape = 'u32[144,128]{1,0:T(1,128)}', space=vmem, size = 0x12000, scoped, tag = 'internal scratch']
  %s0 = inlined_call_operand.hbm [shape: bf16[2,256,128], index: 0, kind: input, shape index: {}]
  %s1 = inlined_call_operand.hbm [shape: f32[1,128], index: 1, kind: input, shape index: {}]
  %s2 = inlined_call_operand.hbm [shape: f32[1,128], index: 2, kind: input, shape index: {}]
  %s3 = inlined_call_operand.hbm [shape: f32[2,256,128], index: 3, kind: output, shape index: {}]
  %s4 = sld [smem:[#allocation0]]
  $region57: #{cnn_block_forward.3} parent=0
    _
  %s6 = ssub.s32 1, %s4
  %s7 = scalar_select 0, %s6, %s4
  $region1: #{cnn_block_forward.3} parent=0
    #allocation2 [shape = 'u8[131072]{0}', space=vmem, size = 0x20000, scoped, tag = 'input window, operand 0']
    #allocation3 [shape = 's32[2]{0}', space=sflag, size = 0x8, scoped, tag = 'scoped memory for cnn_block_forward.3']
    #allocation4 [shape = 's32[2]{0}', space=sflag, size = 0x8, scoped, tag = 'scoped memory for cnn_block_forward.3']
    #allocation5 [shape = 'u8[512]{0}', space=vmem, size = 0x400, scoped, tag = 'input window, operand 1, single buffered']
    #allocation6 [shape = 's32[1]{0}', space=sflag, size = 0x4, scoped, tag = 'scoped memory for cnn_block_forward.3']
    #allocation7 [shape = 'u8[512]{0}', space=vmem, size = 0x400, scoped, tag = 'input window, operand 2, single buffered']
    #allocation8 [shape = 'u8[262144]{0}', space=vmem, size = 0x40000, scoped, tag = 'output window, operand 0']
    %8 = vsyncpa [#allocation3], 0
    %s9 = scalar_lea.sflag [#allocation3], 1
    %10 = vsyncpa %s9, 0
    %11 = vsyncpa [#allocation6], 0
    %12 = vsyncpa [#allocation4], 0
    %s13 = scalar_lea.sflag [#allocation4], 1
    %14 = vsyncpa %s13, 0
    loop: start=0, step=1, limit=4
    $region2: #{cnn_block_forward.3} parent=1 // loop_pre_header
      _
    $region3: #{cnn_block_forward.3} parent=1 // loop_header
      %s16 = sphi 0, %s20
      %p17 = scmp.ge.s32.totalorder %s16, 4
      %s23 = sphi 0, %s35
      %s24 = sphi 0, %s31
      %s25 = sphi 0, %s23
      %s26 = sphi 0, %s24
      %s27 = sphi 0, %s25
      %s28 = sphi 0, %s26
      %s40 = sphi 0, %s42
      %s43 = sphi 0, %s40
      %s44 = sphi 0, %s43
      %s60 = sphi 0, %s44
      %s64 = sphi 0, %s64
      %s66 = sphi 0, %s64
      %s67 = sphi 0, %s66
      %s81 = sphi 0, %s67
      %s85 = sphi 0, %s85
      %s87 = sphi 0, %s85
      %s88 = sphi 0, %s87
      %s102 = sphi 0, %s88
      %s110 = sphi 0, %s112
      %s113 = sphi 0, %s110
      %s114 = sphi 0, %s113
      %s130 = sphi 0, %s114
    $region4: #{cnn_block_forward.3} parent=1 // loop_header_branch
      %19 = sbr.rel (%p17) target = $region8
    $region5: #{cnn_block_forward.3} parent=1 // loop_body
      %s21 = ssub.s32 %s16, 1
      %s22 = ssub.s32 %s16, 2
      %s29 = sadd.s32 1, %s24
      %p30 = scmp.ge.s32.totalorder %s29, 1
      %s31 = scalar_select %p30, 0, %s29
      %s32 = sadd.s32 1, %s23
      %s33 = scalar_select %p30, %s32, %s23
      %p34 = scmp.ge.s32.totalorder %s33, 2
      %s35 = scalar_select %p34, 0, %s33
      %s36 = ssub.s32 %s23, %s35
      %s37 = ssub.s32 %s24, %s31
      %s38 = sor.u32 %s36, %s37
      %p39 = scmp.eq.s32.totalorder %s38, 0
      %s41 = sadd.s32 %s40, 1
      %s42 = scalar_select %p39, %s40, %s41
      %p45 = pneg %p39
      %p46 = scmp.eq.s32.totalorder %s16, 1
      %p47 = por %p45, %p46
      %p48 = scmp.ne.s32.totalorder %s40, %s43
      %p49 = scmp.eq.s32.totalorder %s16, 0
      %p50 = por %p48, %p49
      %p51 = scmp.ne.s32.totalorder %s40, %s43
      %p52 = scmp.eq.s32.totalorder %s21, 1
      %p53 = por %p51, %p52
      %p54 = scmp.ne.s32.totalorder %s43, %s44
      %p55 = scmp.eq.s32.totalorder %s21, 0
      %p56 = por %p54, %p55
      %p57 = scmp.ne.s32.totalorder %s43, %s44
      %p58 = scmp.eq.s32.totalorder %s22, 1
      %p59 = por %p57, %p58
      %p61 = scmp.ne.s32.totalorder %s44, %s60
      %p62 = scmp.eq.s32.totalorder %s22, 0
      %p63 = por %p61, %p62
      %s65 = sadd.s32 %s64, 1
      %p68 = scmp.eq.s32.totalorder %s16, 1
      %p69 = scmp.ne.s32.totalorder %s64, %s66
      %p70 = scmp.eq.s32.totalorder %s16, 0
      %p71 = por %p69, %p70
      %p72 = scmp.ne.s32.totalorder %s64, %s66
      %p73 = scmp.eq.s32.totalorder %s21, 1
      %p74 = por %p72, %p73
      %p75 = scmp.ne.s32.totalorder %s66, %s67
      %p76 = scmp.eq.s32.totalorder %s21, 0
      %p77 = por %p75, %p76
      %p78 = scmp.ne.s32.totalorder %s66, %s67
      %p79 = scmp.eq.s32.totalorder %s22, 1
      %p80 = por %p78, %p79
      %p82 = scmp.ne.s32.totalorder %s67, %s81
      %p83 = scmp.eq.s32.totalorder %s22, 0
      %p84 = por %p82, %p83
      %s86 = sadd.s32 %s85, 1
      %p89 = scmp.eq.s32.totalorder %s16, 1
      %p90 = scmp.ne.s32.totalorder %s85, %s87
      %p91 = scmp.eq.s32.totalorder %s16, 0
      %p92 = por %p90, %p91
      %p93 = scmp.ne.s32.totalorder %s85, %s87
      %p94 = scmp.eq.s32.totalorder %s21, 1
      %p95 = por %p93, %p94
      %p96 = scmp.ne.s32.totalorder %s87, %s88
      %p97 = scmp.eq.s32.totalorder %s21, 0
      %p98 = por %p96, %p97
      %p99 = scmp.ne.s32.totalorder %s87, %s88
      %p100 = scmp.eq.s32.totalorder %s22, 1
      %p101 = por %p99, %p100
      %p103 = scmp.ne.s32.totalorder %s88, %s102
      %p104 = scmp.eq.s32.totalorder %s22, 0
      %p105 = por %p103, %p104
      %s106 = ssub.s32 %s23, %s35
      %s107 = ssub.s32 %s24, %s31
      %s108 = sor.u32 %s106, %s107
      %p109 = scmp.eq.s32.totalorder %s108, 0
      %s111 = sadd.s32 %s110, 1
      %s112 = scalar_select %p109, %s110, %s111
      %p115 = pneg %p109
      %p116 = scmp.eq.s32.totalorder %s16, 1
      %p117 = por %p115, %p116
      %p118 = scmp.ne.s32.totalorder %s110, %s113
      %p119 = scmp.eq.s32.totalorder %s16, 0
      %p120 = por %p118, %p119
      %p121 = scmp.ne.s32.totalorder %s110, %s113
      %p122 = scmp.eq.s32.totalorder %s21, 1
      %p123 = por %p121, %p122
      %p124 = scmp.ne.s32.totalorder %s113, %s114
      %p125 = scmp.eq.s32.totalorder %s21, 0
      %p126 = por %p124, %p125
      %p127 = scmp.ne.s32.totalorder %s113, %s114
      %p128 = scmp.eq.s32.totalorder %s22, 1
      %p129 = por %p127, %p128
      %p131 = scmp.ne.s32.totalorder %s114, %s130
      %p132 = scmp.eq.s32.totalorder %s22, 0
      %p133 = por %p131, %p132
      %p134 = scmp.le.s32.totalorder 1, %s16
      %p135 = scmp.lt.s32.totalorder %s16, 3
      %p136 = pnand %p134, %p135
      %p137 = pneg %p136
      // Predicated region
      $region9: #{cnn_block_forward.3} parent=5 // pred_check
        _
      $region10: #{cnn_block_forward.3} parent=5 // pred_check_branch
        %139 = sbr.rel (%p136) target = $region12
      $region11: #{cnn_block_forward.3} parent=5 // pred_region
        %s140 = ssub.s32 %s16, 1
        // Predicated region
        $region13: #{cnn_block_forward.3} parent=11 // pred_check
          %p141 = pneg %p77
        $region14: #{cnn_block_forward.3} parent=11 // pred_check_branch
          %143 = sbr.rel (%p141) target = $region16
        $region15: #{cnn_block_forward.3} parent=11 // pred_region
          %s145 = ssub.s32 16, 16
          %146 = vsyncadd [#allocation6], %s145
          %s148 = sshll.u32 [#allocation5], 4
          %s149 = int_to_ptr.vmem [resolvable:$true] %s148
          %151 = dma.hbm_to_vmem [thread:$0]  %s1, 16, %s149, [#allocation6]
        $region16: #{cnn_block_forward.3} parent=11 // pred_fallthru
          _
        // Predicated region
        $region17: #{cnn_block_forward.3} parent=11 // pred_check
          %p152 = pneg %p98
        $region18: #{cnn_block_forward.3} parent=11 // pred_check_branch
          %154 = sbr.rel (%p152) target = $region20
        $region19: #{cnn_block_forward.3} parent=11 // pred_region
          %s156 = ssub.s32 16, 16
          %157 = vsyncadd [#allocation6], %s156
          %s159 = sshll.u32 [#allocation7], 4
          %s160 = int_to_ptr.vmem [resolvable:$true] %s159
          %162 = dma.hbm_to_vmem [thread:$0]  %s2, 16, %s160, [#allocation6]
        $region20: #{cnn_block_forward.3} parent=11 // pred_fallthru
          _
      $region12: #{cnn_block_forward.3} parent=5 // pred_fallthru
        _
      %p163 = scmp.lt.s32.totalorder %s16, 2
      // Predicated region
      $region21: #{cnn_block_forward.3} parent=5 // pred_check
        %p164 = pneg %p163
      $region22: #{cnn_block_forward.3} parent=5 // pred_check_branch
        %166 = sbr.rel (%p164) target = $region24
      $region23: #{cnn_block_forward.3} parent=5 // pred_region
        // Predicated region
        $region25: #{cnn_block_forward.3} parent=23 // pred_check
          %p167 = pneg %p50
        $region26: #{cnn_block_forward.3} parent=23 // pred_check_branch
          %169 = sbr.rel (%p167) target = $region28
        $region27: #{cnn_block_forward.3} parent=23 // pred_region
          %s170 = sand.u32 %s40, 1
          %s171 = scalar_lea.sflag [#allocation3], %s170
          %s172 = sand.u32 %s40, 1
          %s173 = smul.addr %s172, 128
          %s174 = scalar_lea.vmem [#allocation2], %s173
          %s175 = smul.u32 32, %s24
          %s177 = ssub.s32 2048, 2048
          %178 = vsyncadd %s171, %s177
          %s179 = smul.addr %s23, 32
          %s180 = sadd.s32 %s175, %s179
          %s181 = smul.addr %s180, 64
          %s182 = scalar_lea.hbm %s0, %s181
          %s183 = sshll.u32 %s174, 4
          %s184 = int_to_ptr.vmem [resolvable:$true] %s183
          %189 = dma.hbm_to_vmem [thread:$0]  %s182, 2048, %s184, %s171, 64, 64, 4
        $region28: #{cnn_block_forward.3} parent=23 // pred_fallthru
          _
      $region24: #{cnn_block_forward.3} parent=5 // pred_fallthru
        _
      %p190 = scmp.le.s32.totalorder 1, %s16
      %p191 = scmp.lt.s32.totalorder %s16, 3
      %p192 = pnand %p190, %p191
      %p193 = pneg %p192
      // Predicated region
      $region29: #{cnn_block_forward.3} parent=5 // pred_check
        _
      $region30: #{cnn_block_forward.3} parent=5 // pred_check_branch
        %195 = sbr.rel (%p192) target = $region32
      $region31: #{cnn_block_forward.3} parent=5 // pred_region
        %s196 = ssub.s32 %s16, 1
        %s197 = sand.u32 %s43, 1
        %s198 = scalar_lea.sflag [#allocation3], %s197
        %s199 = sand.u32 %s43, 1
        %s200 = smul.addr %s199, 128
        %s201 = scalar_lea.vmem [#allocation2], %s200
        // Predicated region
        $region33: #{cnn_block_forward.3} parent=31 // pred_check
          %p202 = pneg %p56
        $region34: #{cnn_block_forward.3} parent=31 // pred_check_branch
          %204 = sbr.rel (%p202) target = $region36
        $region35: #{cnn_block_forward.3} parent=31 // pred_region
          %205 = dma.done %s198, 2048
        $region36: #{cnn_block_forward.3} parent=31 // pred_fallthru
          _
        // Predicated region
        $region37: #{cnn_block_forward.3} parent=31 // pred_check
          %p206 = pneg %p77
        $region38: #{cnn_block_forward.3} parent=31 // pred_check_branch
          %208 = sbr.rel (%p206) target = $region40
        $region39: #{cnn_block_forward.3} parent=31 // pred_region
          %209 = dma.done [#allocation6], 16
        $region40: #{cnn_block_forward.3} parent=31 // pred_fallthru
          _
        // Predicated region
        $region41: #{cnn_block_forward.3} parent=31 // pred_check
          %p210 = pneg %p98
        $region42: #{cnn_block_forward.3} parent=31 // pred_check_branch
          %212 = sbr.rel (%p210) target = $region44
        $region43: #{cnn_block_forward.3} parent=31 // pred_region
          %213 = dma.done [#allocation6], 16
        $region44: #{cnn_block_forward.3} parent=31 // pred_fallthru
          _
        %s214 = sand.u32 %s43, 1
        %s215 = scalar_lea.sflag [#allocation3], %s214
        %s216 = sand.u32 %s43, 1
        %s217 = smul.addr %s216, 128
        %s218 = scalar_lea.vmem [#allocation2], %s217
        %p219 = pneg %p56
        %p220 = pneg %p53
        %p221 = pneg %p77
        %p222 = pneg %p74
        %p223 = pneg %p98
        %p224 = pneg %p95
        %p225 = pneg %p126
        %p226 = pneg %p123
        %s227 = sand.u32 %s113, 1
        %s228 = scalar_lea.sflag [#allocation4], %s227
        %s229 = sand.u32 %s113, 1
        %s230 = smul.addr %s229, 256
        %s231 = scalar_lea.vmem [#allocation8], %s230
        %s232 = smul.u32 32, %s26
        %s233 = smul.u32 32, %s26
        %v234 = vld [vmem:[%s201] sm:$0xf]
        %v235 = vld [vmem:[%s201 + $0x4] sm:$0xf]
        %v236 = vld [vmem:[%s201 + $0x8] sm:$0xf]
        %v237 = vld [vmem:[%s201 + $0xc] sm:$0xf]
        %v238 = vld [vmem:[%s201 + $0x10] sm:$0xf]
        %v239 = vld [vmem:[%s201 + $0x14] sm:$0xf]
        %v240 = vld [vmem:[%s201 + $0x18] sm:$0xf]
        %v241 = vld [vmem:[%s201 + $0x1c] sm:$0xf]
        %v242 = vld [vmem:[%s201 + $0x20] sm:$0xf]
        %v243 = vld [vmem:[%s201 + $0x24] sm:$0xf]
        %v244 = vld [vmem:[%s201 + $0x28] sm:$0xf]
        %v245 = vld [vmem:[%s201 + $0x2c] sm:$0xf]
        %v246 = vld [vmem:[%s201 + $0x30] sm:$0xf]
        %v247 = vld [vmem:[%s201 + $0x34] sm:$0xf]
        %v248 = vld [vmem:[%s201 + $0x38] sm:$0xf]
        %v249 = vld [vmem:[%s201 + $0x3c] sm:$0xf]
        %v250 = vld [vmem:[%s201 + $0x40] sm:$0xf]
        %v251 = vld [vmem:[%s201 + $0x44] sm:$0xf]
        %v252 = vld [vmem:[%s201 + $0x48] sm:$0xf]
        %v253 = vld [vmem:[%s201 + $0x4c] sm:$0xf]
        %v254 = vld [vmem:[%s201 + $0x50] sm:$0xf]
        %v255 = vld [vmem:[%s201 + $0x54] sm:$0xf]
        %v256 = vld [vmem:[%s201 + $0x58] sm:$0xf]
        %v257 = vld [vmem:[%s201 + $0x5c] sm:$0xf]
        %v258 = vld [vmem:[%s201 + $0x60] sm:$0xf]
        %v259 = vld [vmem:[%s201 + $0x64] sm:$0xf]
        %v260 = vld [vmem:[%s201 + $0x68] sm:$0xf]
        %v261 = vld [vmem:[%s201 + $0x6c] sm:$0xf]
        %v262 = vld [vmem:[%s201 + $0x70] sm:$0xf]
        %v263 = vld [vmem:[%s201 + $0x74] sm:$0xf]
        %v264 = vld [vmem:[%s201 + $0x78] sm:$0xf]
        %v265 = vld [vmem:[%s201 + $0x7c] sm:$0xf]
        %v266 = vunpack.c.l.bf16 %v234
        %v267 = vunpack.c.l.bf16 %v235
        %v268 = vunpack.c.l.bf16 %v236
        %v269 = vunpack.c.l.bf16 %v237
        %v270 = vunpack.c.l.bf16 %v238
        %v271 = vunpack.c.l.bf16 %v239
        %v272 = vunpack.c.l.bf16 %v240
        %v273 = vunpack.c.l.bf16 %v241
        %v274 = vunpack.c.l.bf16 %v242
        %v275 = vunpack.c.l.bf16 %v243
        %v276 = vunpack.c.l.bf16 %v244
        %v277 = vunpack.c.l.bf16 %v245
        %v278 = vunpack.c.l.bf16 %v246
        %v279 = vunpack.c.l.bf16 %v247
        %v280 = vunpack.c.l.bf16 %v248
        %v281 = vunpack.c.l.bf16 %v249
        %v282 = vunpack.c.l.bf16 %v250
        %v283 = vunpack.c.l.bf16 %v251
        %v284 = vunpack.c.l.bf16 %v252
        %v285 = vunpack.c.l.bf16 %v253
        %v286 = vunpack.c.l.bf16 %v254
        %v287 = vunpack.c.l.bf16 %v255
        %v288 = vunpack.c.l.bf16 %v256
        %v289 = vunpack.c.l.bf16 %v257
        %v290 = vunpack.c.l.bf16 %v258
        %v291 = vunpack.c.l.bf16 %v259
        %v292 = vunpack.c.l.bf16 %v260
        %v293 = vunpack.c.l.bf16 %v261
        %v294 = vunpack.c.l.bf16 %v262
        %v295 = vunpack.c.l.bf16 %v263
        %v296 = vunpack.c.l.bf16 %v264
        %v297 = vunpack.c.l.bf16 %v265
        %v298 = vld [vmem:[#allocation5] sm:$0x1]
        %v300 = vlaneseq
        %v301 = vshrl.u32 %v300, 7
        %v302 = vsub.s32 0, %v301
        %v303 = vrot.slane %v298, %v302
        %v305 = vmul.f32 %v266, %v303
        %v306 = vmul.f32 %v267, %v303
        %v307 = vmul.f32 %v268, %v303
        %v308 = vmul.f32 %v269, %v303
        %v309 = vmul.f32 %v270, %v303
        %v310 = vmul.f32 %v271, %v303
        %v311 = vmul.f32 %v272, %v303
        %v312 = vmul.f32 %v273, %v303
        %v313 = vmul.f32 %v274, %v303
        %v314 = vmul.f32 %v275, %v303
        %v315 = vmul.f32 %v276, %v303
        %v316 = vmul.f32 %v277, %v303
        %v317 = vmul.f32 %v278, %v303
        %v318 = vmul.f32 %v279, %v303
        %v319 = vmul.f32 %v280, %v303
        %v320 = vmul.f32 %v281, %v303
        %v321 = vmul.f32 %v282, %v303
        %v322 = vmul.f32 %v283, %v303
        %v323 = vmul.f32 %v284, %v303
        %v324 = vmul.f32 %v285, %v303
        %v325 = vmul.f32 %v286, %v303
        %v326 = vmul.f32 %v287, %v303
        %v327 = vmul.f32 %v288, %v303
        %v328 = vmul.f32 %v289, %v303
        %v329 = vmul.f32 %v290, %v303
        %v330 = vmul.f32 %v291, %v303
        %v331 = vmul.f32 %v292, %v303
        %v332 = vmul.f32 %v293, %v303
        %v333 = vmul.f32 %v294, %v303
        %v334 = vmul.f32 %v295, %v303
        %v335 = vmul.f32 %v296, %v303
        %v336 = vmul.f32 %v297, %v303
        %v337 = vld [vmem:[#allocation7] sm:$0x1]
        %v339 = vlaneseq
        %v340 = vshrl.u32 %v339, 7
        %v341 = vsub.s32 0, %v340
        %v342 = vrot.slane %v337, %v341
        %v344 = vadd.f32 %v305, %v342
        %v345 = vadd.f32 %v306, %v342
        %v346 = vadd.f32 %v307, %v342
        %v347 = vadd.f32 %v308, %v342
        %v348 = vadd.f32 %v309, %v342
        %v349 = vadd.f32 %v310, %v342
        %v350 = vadd.f32 %v311, %v342
        %v351 = vadd.f32 %v312, %v342
        %v352 = vadd.f32 %v313, %v342
        %v353 = vadd.f32 %v314, %v342
        %v354 = vadd.f32 %v315, %v342
        %v355 = vadd.f32 %v316, %v342
        %v356 = vadd.f32 %v317, %v342
        %v357 = vadd.f32 %v318, %v342
        %v358 = vadd.f32 %v319, %v342
        %v359 = vadd.f32 %v320, %v342
        %v360 = vadd.f32 %v321, %v342
        %v361 = vadd.f32 %v322, %v342
        %v362 = vadd.f32 %v323, %v342
        %v363 = vadd.f32 %v324, %v342
        %v364 = vadd.f32 %v325, %v342
        %v365 = vadd.f32 %v326, %v342
        %v366 = vadd.f32 %v327, %v342
        %v367 = vadd.f32 %v328, %v342
        %v368 = vadd.f32 %v329, %v342
        %v369 = vadd.f32 %v330, %v342
        %v370 = vadd.f32 %v331, %v342
        %v371 = vadd.f32 %v332, %v342
        %v372 = vadd.f32 %v333, %v342
        %v373 = vadd.f32 %v334, %v342
        %v374 = vadd.f32 %v335, %v342
        %v375 = vadd.f32 %v336, %v342
        %vm376 = vcmp.gt.f32.partialorder %v344, 0.0
        %vm377 = vcmp.gt.f32.partialorder %v345, 0.0
        %vm378 = vcmp.gt.f32.partialorder %v346, 0.0
        %vm379 = vcmp.gt.f32.partialorder %v347, 0.0
        %vm380 = vcmp.gt.f32.partialorder %v348, 0.0
        %vm381 = vcmp.gt.f32.partialorder %v349, 0.0
        %vm382 = vcmp.gt.f32.partialorder %v350, 0.0
        %vm383 = vcmp.gt.f32.partialorder %v351, 0.0
        %vm384 = vcmp.gt.f32.partialorder %v352, 0.0
        %vm385 = vcmp.gt.f32.partialorder %v353, 0.0
        %vm386 = vcmp.gt.f32.partialorder %v354, 0.0
        %vm387 = vcmp.gt.f32.partialorder %v355, 0.0
        %vm388 = vcmp.gt.f32.partialorder %v356, 0.0
        %vm389 = vcmp.gt.f32.partialorder %v357, 0.0
        %vm390 = vcmp.gt.f32.partialorder %v358, 0.0
        %vm391 = vcmp.gt.f32.partialorder %v359, 0.0
        %vm392 = vcmp.gt.f32.partialorder %v360, 0.0
        %vm393 = vcmp.gt.f32.partialorder %v361, 0.0
        %vm394 = vcmp.gt.f32.partialorder %v362, 0.0
        %vm395 = vcmp.gt.f32.partialorder %v363, 0.0
        %vm396 = vcmp.gt.f32.partialorder %v364, 0.0
        %vm397 = vcmp.gt.f32.partialorder %v365, 0.0
        %vm398 = vcmp.gt.f32.partialorder %v366, 0.0
        %vm399 = vcmp.gt.f32.partialorder %v367, 0.0
        %vm400 = vcmp.gt.f32.partialorder %v368, 0.0
        %vm401 = vcmp.gt.f32.partialorder %v369, 0.0
        %vm402 = vcmp.gt.f32.partialorder %v370, 0.0
        %vm403 = vcmp.gt.f32.partialorder %v371, 0.0
        %vm404 = vcmp.gt.f32.partialorder %v372, 0.0
        %vm405 = vcmp.gt.f32.partialorder %v373, 0.0
        %vm406 = vcmp.gt.f32.partialorder %v374, 0.0
        %vm407 = vcmp.gt.f32.partialorder %v375, 0.0
        %v408 = vmul.f32 %v344, 0.1
        %v409 = vmul.f32 %v345, 0.1
        %v410 = vmul.f32 %v346, 0.1
        %v411 = vmul.f32 %v347, 0.1
        %v412 = vmul.f32 %v348, 0.1
        %v413 = vmul.f32 %v349, 0.1
        %v414 = vmul.f32 %v350, 0.1
        %v415 = vmul.f32 %v351, 0.1
        %v416 = vmul.f32 %v352, 0.1
        %v417 = vmul.f32 %v353, 0.1
        %v418 = vmul.f32 %v354, 0.1
        %v419 = vmul.f32 %v355, 0.1
        %v420 = vmul.f32 %v356, 0.1
        %v421 = vmul.f32 %v357, 0.1
        %v422 = vmul.f32 %v358, 0.1
        %v423 = vmul.f32 %v359, 0.1
        %v424 = vmul.f32 %v360, 0.1
        %v425 = vmul.f32 %v361, 0.1
        %v426 = vmul.f32 %v362, 0.1
        %v427 = vmul.f32 %v363, 0.1
        %v428 = vmul.f32 %v364, 0.1
        %v429 = vmul.f32 %v365, 0.1
        %v430 = vmul.f32 %v366, 0.1
        %v431 = vmul.f32 %v367, 0.1
        %v432 = vmul.f32 %v368, 0.1
        %v433 = vmul.f32 %v369, 0.1
        %v434 = vmul.f32 %v370, 0.1
        %v435 = vmul.f32 %v371, 0.1
        %v436 = vmul.f32 %v372, 0.1
        %v437 = vmul.f32 %v373, 0.1
        %v438 = vmul.f32 %v374, 0.1
        %v439 = vmul.f32 %v375, 0.1
        %v440 = vsel %vm376, %v344, %v408
        %v441 = vsel %vm377, %v345, %v409
        %v442 = vsel %vm378, %v346, %v410
        %v443 = vsel %vm379, %v347, %v411
        %v444 = vsel %vm380, %v348, %v412
        %v445 = vsel %vm381, %v349, %v413
        %v446 = vsel %vm382, %v350, %v414
        %v447 = vsel %vm383, %v351, %v415
        %v448 = vsel %vm384, %v352, %v416
        %v449 = vsel %vm385, %v353, %v417
        %v450 = vsel %vm386, %v354, %v418
        %v451 = vsel %vm387, %v355, %v419
        %v452 = vsel %vm388, %v356, %v420
        %v453 = vsel %vm389, %v357, %v421
        %v454 = vsel %vm390, %v358, %v422
        %v455 = vsel %vm391, %v359, %v423
        %v456 = vsel %vm392, %v360, %v424
        %v457 = vsel %vm393, %v361, %v425
        %v458 = vsel %vm394, %v362, %v426
        %v459 = vsel %vm395, %v363, %v427
        %v460 = vsel %vm396, %v364, %v428
        %v461 = vsel %vm397, %v365, %v429
        %v462 = vsel %vm398, %v366, %v430
        %v463 = vsel %vm399, %v367, %v431
        %v464 = vsel %vm400, %v368, %v432
        %v465 = vsel %vm401, %v369, %v433
        %v466 = vsel %vm402, %v370, %v434
        %v467 = vsel %vm403, %v371, %v435
        %v468 = vsel %vm404, %v372, %v436
        %v469 = vsel %vm405, %v373, %v437
        %v470 = vsel %vm406, %v374, %v438
        %v471 = vsel %vm407, %v375, %v439
        %472 = vst [vmem:[%s231] sm:$0xff] %v440
        %473 = vst [vmem:[%s231 + $0x8] sm:$0xff] %v441
        %474 = vst [vmem:[%s231 + $0x10] sm:$0xff] %v442
        %475 = vst [vmem:[%s231 + $0x18] sm:$0xff] %v443
        %476 = vst [vmem:[%s231 + $0x20] sm:$0xff] %v444
        %477 = vst [vmem:[%s231 + $0x28] sm:$0xff] %v445
        %478 = vst [vmem:[%s231 + $0x30] sm:$0xff] %v446
        %479 = vst [vmem:[%s231 + $0x38] sm:$0xff] %v447
        %480 = vst [vmem:[%s231 + $0x40] sm:$0xff] %v448
        %481 = vst [vmem:[%s231 + $0x48] sm:$0xff] %v449
        %482 = vst [vmem:[%s231 + $0x50] sm:$0xff] %v450
        %483 = vst [vmem:[%s231 + $0x58] sm:$0xff] %v451
        %484 = vst [vmem:[%s231 + $0x60] sm:$0xff] %v452
        %485 = vst [vmem:[%s231 + $0x68] sm:$0xff] %v453
        %486 = vst [vmem:[%s231 + $0x70] sm:$0xff] %v454
        %487 = vst [vmem:[%s231 + $0x78] sm:$0xff] %v455
        %488 = vst [vmem:[%s231 + $0x80] sm:$0xff] %v456
        %489 = vst [vmem:[%s231 + $0x88] sm:$0xff] %v457
        %490 = vst [vmem:[%s231 + $0x90] sm:$0xff] %v458
        %491 = vst [vmem:[%s231 + $0x98] sm:$0xff] %v459
        %492 = vst [vmem:[%s231 + $0xa0] sm:$0xff] %v460
        %493 = vst [vmem:[%s231 + $0xa8] sm:$0xff] %v461
        %494 = vst [vmem:[%s231 + $0xb0] sm:$0xff] %v462
        %495 = vst [vmem:[%s231 + $0xb8] sm:$0xff] %v463
        %496 = vst [vmem:[%s231 + $0xc0] sm:$0xff] %v464
        %497 = vst [vmem:[%s231 + $0xc8] sm:$0xff] %v465
        %498 = vst [vmem:[%s231 + $0xd0] sm:$0xff] %v466
        %499 = vst [vmem:[%s231 + $0xd8] sm:$0xff] %v467
        %500 = vst [vmem:[%s231 + $0xe0] sm:$0xff] %v468
        %501 = vst [vmem:[%s231 + $0xe8] sm:$0xff] %v469
        %502 = vst [vmem:[%s231 + $0xf0] sm:$0xff] %v470
        %503 = vst [vmem:[%s231 + $0xf8] sm:$0xff] %v471
        %s504 = sand.u32 %s113, 1
        %s505 = scalar_lea.sflag [#allocation4], %s504
        %s506 = sand.u32 %s113, 1
        %s507 = smul.addr %s506, 256
        %s508 = scalar_lea.vmem [#allocation8], %s507
        // Predicated region
        $region45: #{cnn_block_forward.3} parent=31 // pred_check
          %p509 = pneg %p123
        $region46: #{cnn_block_forward.3} parent=31 // pred_check_branch
          %511 = sbr.rel (%p509) target = $region48
        $region47: #{cnn_block_forward.3} parent=31 // pred_region
          %s512 = smul.u32 32, %s26
          %s514 = ssub.s32 4096, 4096
          %515 = vsyncadd %s505, %s514
          %s516 = smul.addr %s25, 32
          %s517 = sadd.s32 %s512, %s516
          %s518 = smul.addr %s517, 128
          %s519 = scalar_lea.hbm %s3, %s518
          %s520 = sshll.u32 %s508, 4
          %s521 = int_to_ptr.vmem [resolvable:$true] %s520
          %526 = dma.vmem_to_hbm [thread:$0]  %s521, 4096, %s519, %s505, 128, 128, 8
        $region48: #{cnn_block_forward.3} parent=31 // pred_fallthru
          _
      $region32: #{cnn_block_forward.3} parent=5 // pred_fallthru
        _
      %p527 = scmp.le.s32.totalorder 2, %s16
      // Predicated region
      $region49: #{cnn_block_forward.3} parent=5 // pred_check
        %p528 = pneg %p527
      $region50: #{cnn_block_forward.3} parent=5 // pred_check_branch
        %530 = sbr.rel (%p528) target = $region52
      $region51: #{cnn_block_forward.3} parent=5 // pred_region
        %s531 = ssub.s32 %s16, 2
        // Predicated region
        $region53: #{cnn_block_forward.3} parent=51 // pred_check
          %p532 = pneg %p129
        $region54: #{cnn_block_forward.3} parent=51 // pred_check_branch
          %534 = sbr.rel (%p532) target = $region56
        $region55: #{cnn_block_forward.3} parent=51 // pred_region
          %s535 = sand.u32 %s114, 1
          %s536 = scalar_lea.sflag [#allocation4], %s535
          %s537 = sand.u32 %s114, 1
          %s538 = smul.addr %s537, 256
          %s539 = scalar_lea.vmem [#allocation8], %s538
          %540 = dma.done %s536, 4096
        $region56: #{cnn_block_forward.3} parent=51 // pred_fallthru
          _
      $region52: #{cnn_block_forward.3} parent=5 // pred_fallthru
        _
    $region6: #{cnn_block_forward.3} parent=1 // loop_footer
      %s20 = sadd.s32 1, %s16
    $region7: #{cnn_block_forward.3} parent=1 // loop_footer_branch
      %15 = sbr.rel target = $region3
    $region8: #{cnn_block_forward.3} parent=1 // loop_exit
      _
    %541 = vsyncpa [#allocation3], 1
    %s542 = scalar_lea.sflag [#allocation3], 1
    %543 = vsyncpa %s542, 1
    %544 = vsyncpa [#allocation6], 1
    %545 = vsyncpa [#allocation4], 1
    %s546 = scalar_lea.sflag [#allocation4], 1
    %547 = vsyncpa %s546, 1

// kernel: cnn_block_forward.2
$region0: #{cnn_block_forward.2}
  #allocation0 [shape = 'u32[]', space=smem, size = 0x4, offset = 0x4, fixed_abs, tag = 'smem constant byte address 0x4 - core index']
  #allocation1 [shape = 'u32[144,128]{1,0:T(1,128)}', space=vmem, size = 0x12000, scoped, tag = 'internal scratch']
  #allocation2 [shape = 'f32[256,128]{1,0:T(8,128)}', space=vmem, size = 0x20000, scoped, tag = 'scratch operand']
  %s0 = inlined_call_operand.hbm [shape: bf16[2,256,128], index: 0, kind: input, shape index: {}]
  %s1 = inlined_call_operand.hbm [shape: bf16[1,128,128], index: 1, kind: input, shape index: {}]
  %s2 = inlined_call_operand.hbm [shape: bf16[2,256,128], index: 2, kind: output, shape index: {0}]
  %s3 = inlined_call_operand.hbm [shape: f32[2,2,128], index: 3, kind: output, shape index: {1}]
  %4 = xla_tuple %s2, %s3
  %s5 = sld [smem:[#allocation0]]
  $region65: #{cnn_block_forward.2} parent=0
    _
  %s7 = ssub.s32 1, %s5
  %s8 = scalar_select 0, %s7, %s5
  $region1: #{cnn_block_forward.2} parent=0
    #allocation3 [shape = 'u8[131072]{0}', space=vmem, size = 0x20000, scoped, tag = 'input window, operand 0']
    #allocation4 [shape = 's32[2]{0}', space=sflag, size = 0x8, scoped, tag = 'scoped memory for cnn_block_forward.2']
    #allocation5 [shape = 's32[2]{0}', space=sflag, size = 0x8, scoped, tag = 'scoped memory for cnn_block_forward.2']
    #allocation6 [shape = 'u8[32768]{0}', space=vmem, size = 0x8000, scoped, tag = 'input window, operand 1, single buffered']
    #allocation7 [shape = 's32[1]{0}', space=sflag, size = 0x4, scoped, tag = 'scoped memory for cnn_block_forward.2']
    #allocation8 [shape = 'u8[131072]{0}', space=vmem, size = 0x20000, scoped, tag = 'output window, operand 0']
    #allocation9 [shape = 'u8[2048]{0}', space=vmem, size = 0x800, scoped, tag = 'output window, operand 1']
    #allocation10 [shape = 's32[2]{0}', space=sflag, size = 0x8, scoped, tag = 'scoped memory for cnn_block_forward.2']
    %9 = vsyncpa [#allocation4], 0
    %s10 = scalar_lea.sflag [#allocation4], 1
    %11 = vsyncpa %s10, 0
    %12 = vsyncpa [#allocation7], 0
    %13 = vsyncpa [#allocation5], 0
    %s14 = scalar_lea.sflag [#allocation5], 1
    %15 = vsyncpa %s14, 0
    %16 = vsyncpa [#allocation10], 0
    %s17 = scalar_lea.sflag [#allocation10], 1
    %18 = vsyncpa %s17, 0
    loop: start=0, step=1, limit=4
    $region2: #{cnn_block_forward.2} parent=1 // loop_pre_header
      _
    $region3: #{cnn_block_forward.2} parent=1 // loop_header
      %s20 = sphi 0, %s24
      %p21 = scmp.ge.s32.totalorder %s20, 4
      %s27 = sphi 0, %s46
      %s28 = sphi 0, %s42
      %s29 = sphi 0, %s38
      %s30 = sphi 0, %s27
      %s31 = sphi 0, %s28
      %s32 = sphi 0, %s29
      %s33 = sphi 0, %s30
      %s34 = sphi 0, %s31
      %s35 = sphi 0, %s32
      %s49 = sphi 0, %s51
      %s52 = sphi 0, %s49
      %s53 = sphi 0, %s52
      %s69 = sphi 0, %s53
      %s75 = sphi 0, %s77
      %s78 = sphi 0, %s75
      %s79 = sphi 0, %s78
      %s95 = sphi 0, %s79
      %s105 = sphi 0, %s107
      %s108 = sphi 0, %s105
      %s109 = sphi 0, %s108
      %s125 = sphi 0, %s109
      %s133 = sphi 0, %s135
      %s136 = sphi 0, %s133
      %s137 = sphi 0, %s136
      %s153 = sphi 0, %s137
    $region4: #{cnn_block_forward.2} parent=1 // loop_header_branch
      %23 = sbr.rel (%p21) target = $region8
    $region5: #{cnn_block_forward.2} parent=1 // loop_body
      %s25 = ssub.s32 %s20, 1
      %s26 = ssub.s32 %s20, 2
      %s36 = sadd.s32 1, %s29
      %p37 = scmp.ge.s32.totalorder %s36, 1
      %s38 = scalar_select %p37, 0, %s36
      %s39 = sadd.s32 1, %s28
      %s40 = scalar_select %p37, %s39, %s28
      %p41 = scmp.ge.s32.totalorder %s40, 1
      %s42 = scalar_select %p41, 0, %s40
      %s43 = sadd.s32 1, %s27
      %s44 = scalar_select %p41, %s43, %s27
      %p45 = scmp.ge.s32.totalorder %s44, 2
      %s46 = scalar_select %p45, 0, %s44
      %s47 = ssub.s32 %s27, %s46
      %p48 = scmp.eq.s32.totalorder %s47, 0
      %s50 = sadd.s32 %s49, 1
      %s51 = scalar_select %p48, %s49, %s50
      %p54 = pneg %p48
      %p55 = scmp.eq.s32.totalorder %s20, 1
      %p56 = por %p54, %p55
      %p57 = scmp.ne.s32.totalorder %s49, %s52
      %p58 = scmp.eq.s32.totalorder %s20, 0
      %p59 = por %p57, %p58
      %p60 = scmp.ne.s32.totalorder %s49, %s52
      %p61 = scmp.eq.s32.totalorder %s25, 1
      %p62 = por %p60, %p61
      %p63 = scmp.ne.s32.totalorder %s52, %s53
      %p64 = scmp.eq.s32.totalorder %s25, 0
      %p65 = por %p63, %p64
      %p66 = scmp.ne.s32.totalorder %s52, %s53
      %p67 = scmp.eq.s32.totalorder %s26, 1
      %p68 = por %p66, %p67
      %p70 = scmp.ne.s32.totalorder %s53, %s69
      %p71 = scmp.eq.s32.totalorder %s26, 0
      %p72 = por %p70, %p71
      %s73 = ssub.s32 %s28, %s42
      %p74 = scmp.eq.s32.totalorder %s73, 0
      %s76 = sadd.s32 %s75, 1
      %s77 = scalar_select %p74, %s75, %s76
      %p80 = pneg %p74
      %p81 = scmp.eq.s32.totalorder %s20, 1
      %p82 = por %p80, %p81
      %p83 = scmp.ne.s32.totalorder %s75, %s78
      %p84 = scmp.eq.s32.totalorder %s20, 0
      %p85 = por %p83, %p84
      %p86 = scmp.ne.s32.totalorder %s75, %s78
      %p87 = scmp.eq.s32.totalorder %s25, 1
      %p88 = por %p86, %p87
      %p89 = scmp.ne.s32.totalorder %s78, %s79
      %p90 = scmp.eq.s32.totalorder %s25, 0
      %p91 = por %p89, %p90
      %p92 = scmp.ne.s32.totalorder %s78, %s79
      %p93 = scmp.eq.s32.totalorder %s26, 1
      %p94 = por %p92, %p93
      %p96 = scmp.ne.s32.totalorder %s79, %s95
      %p97 = scmp.eq.s32.totalorder %s26, 0
      %p98 = por %p96, %p97
      %s99 = ssub.s32 %s27, %s46
      %s100 = ssub.s32 %s29, %s38
      %s101 = sor.u32 %s99, %s100
      %s102 = ssub.s32 %s28, %s42
      %s103 = sor.u32 %s101, %s102
      %p104 = scmp.eq.s32.totalorder %s103, 0
      %s106 = sadd.s32 %s105, 1
      %s107 = scalar_select %p104, %s105, %s106
      %p110 = pneg %p104
      %p111 = scmp.eq.s32.totalorder %s20, 1
      %p112 = por %p110, %p111
      %p113 = scmp.ne.s32.totalorder %s105, %s108
      %p114 = scmp.eq.s32.totalorder %s20, 0
      %p115 = por %p113, %p114
      %p116 = scmp.ne.s32.totalorder %s105, %s108
      %p117 = scmp.eq.s32.totalorder %s25, 1
      %p118 = por %p116, %p117
      %p119 = scmp.ne.s32.totalorder %s108, %s109
      %p120 = scmp.eq.s32.totalorder %s25, 0
      %p121 = por %p119, %p120
      %p122 = scmp.ne.s32.totalorder %s108, %s109
      %p123 = scmp.eq.s32.totalorder %s26, 1
      %p124 = por %p122, %p123
      %p126 = scmp.ne.s32.totalorder %s109, %s125
      %p127 = scmp.eq.s32.totalorder %s26, 0
      %p128 = por %p126, %p127
      %s129 = ssub.s32 %s27, %s46
      %s130 = ssub.s32 %s28, %s42
      %s131 = sor.u32 %s129, %s130
      %p132 = scmp.eq.s32.totalorder %s131, 0
      %s134 = sadd.s32 %s133, 1
      %s135 = scalar_select %p132, %s133, %s134
      %p138 = pneg %p132
      %p139 = scmp.eq.s32.totalorder %s20, 1
      %p140 = por %p138, %p139
      %p141 = scmp.ne.s32.totalorder %s133, %s136
      %p142 = scmp.eq.s32.totalorder %s20, 0
      %p143 = por %p141, %p142
      %p144 = scmp.ne.s32.totalorder %s133, %s136
      %p145 = scmp.eq.s32.totalorder %s25, 1
      %p146 = por %p144, %p145
      %p147 = scmp.ne.s32.totalorder %s136, %s137
      %p148 = scmp.eq.s32.totalorder %s25, 0
      %p149 = por %p147, %p148
      %p150 = scmp.ne.s32.totalorder %s136, %s137
      %p151 = scmp.eq.s32.totalorder %s26, 1
      %p152 = por %p150, %p151
      %p154 = scmp.ne.s32.totalorder %s137, %s153
      %p155 = scmp.eq.s32.totalorder %s26, 0
      %p156 = por %p154, %p155
      %p157 = scmp.le.s32.totalorder 1, %s20
      %p158 = scmp.lt.s32.totalorder %s20, 3
      %p159 = pnand %p157, %p158
      %p160 = pneg %p159
      // Predicated region
      $region9: #{cnn_block_forward.2} parent=5 // pred_check
        _
      $region10: #{cnn_block_forward.2} parent=5 // pred_check_branch
        %162 = sbr.rel (%p159) target = $region12
      $region11: #{cnn_block_forward.2} parent=5 // pred_region
        %s163 = ssub.s32 %s20, 1
        // Predicated region
        $region13: #{cnn_block_forward.2} parent=11 // pred_check
          %p164 = pneg %p91
        $region14: #{cnn_block_forward.2} parent=11 // pred_check_branch
          %166 = sbr.rel (%p164) target = $region16
        $region15: #{cnn_block_forward.2} parent=11 // pred_region
          %s168 = ssub.s32 1024, 1024
          %169 = vsyncadd [#allocation7], %s168
          %s170 = smul.addr %s31, 64
          %s171 = scalar_lea.hbm %s1, %s170
          %s172 = sshll.u32 [#allocation6], 4
          %s173 = int_to_ptr.vmem [resolvable:$true] %s172
          %178 = dma.hbm_to_vmem [thread:$0]  %s171, 1024, %s173, [#allocation7], 64, 64, 4
        $region16: #{cnn_block_forward.2} parent=11 // pred_fallthru
          _
      $region12: #{cnn_block_forward.2} parent=5 // pred_fallthru
        _
      %p179 = scmp.lt.s32.totalorder %s20, 2
      // Predicated region
      $region17: #{cnn_block_forward.2} parent=5 // pred_check
        %p180 = pneg %p179
      $region18: #{cnn_block_forward.2} parent=5 // pred_check_branch
        %182 = sbr.rel (%p180) target = $region20
      $region19: #{cnn_block_forward.2} parent=5 // pred_region
        // Predicated region
        $region21: #{cnn_block_forward.2} parent=19 // pred_check
          %p183 = pneg %p59
        $region22: #{cnn_block_forward.2} parent=19 // pred_check_branch
          %185 = sbr.rel (%p183) target = $region24
        $region23: #{cnn_block_forward.2} parent=19 // pred_region
          %s186 = sand.u32 %s49, 1
          %s187 = scalar_lea.sflag [#allocation4], %s186
          %s188 = sand.u32 %s49, 1
          %s189 = smul.addr %s188, 128
          %s190 = scalar_lea.vmem [#allocation3], %s189
          %s192 = ssub.s32 2048, 2048
          %193 = vsyncadd %s187, %s192
          %s194 = smul.addr %s27, 32
          %s195 = smul.addr %s194, 64
          %s196 = scalar_lea.hbm %s0, %s195
          %s197 = sshll.u32 %s190, 4
          %s198 = int_to_ptr.vmem [resolvable:$true] %s197
          %203 = dma.hbm_to_vmem [thread:$0]  %s196, 2048, %s198, %s187, 64, 64, 4
        $region24: #{cnn_block_forward.2} parent=19 // pred_fallthru
          _
      $region20: #{cnn_block_forward.2} parent=5 // pred_fallthru
        _
      %p204 = scmp.le.s32.totalorder 1, %s20
      %p205 = scmp.lt.s32.totalorder %s20, 3
      %p206 = pnand %p204, %p205
      %p207 = pneg %p206
      // Predicated region
      $region25: #{cnn_block_forward.2} parent=5 // pred_check
        _
      $region26: #{cnn_block_forward.2} parent=5 // pred_check_branch
        %209 = sbr.rel (%p206) target = $region28
      $region27: #{cnn_block_forward.2} parent=5 // pred_region
        %s210 = ssub.s32 %s20, 1
        %s211 = sand.u32 %s52, 1
        %s212 = scalar_lea.sflag [#allocation4], %s211
        %s213 = sand.u32 %s52, 1
        %s214 = smul.addr %s213, 128
        %s215 = scalar_lea.vmem [#allocation3], %s214
        // Predicated region
        $region29: #{cnn_block_forward.2} parent=27 // pred_check
          %p216 = pneg %p65
        $region30: #{cnn_block_forward.2} parent=27 // pred_check_branch
          %218 = sbr.rel (%p216) target = $region32
        $region31: #{cnn_block_forward.2} parent=27 // pred_region
          %219 = dma.done %s212, 2048
        $region32: #{cnn_block_forward.2} parent=27 // pred_fallthru
          _
        // Predicated region
        $region33: #{cnn_block_forward.2} parent=27 // pred_check
          %p220 = pneg %p91
        $region34: #{cnn_block_forward.2} parent=27 // pred_check_branch
          %222 = sbr.rel (%p220) target = $region36
        $region35: #{cnn_block_forward.2} parent=27 // pred_region
          %223 = dma.done [#allocation7], 1024
        $region36: #{cnn_block_forward.2} parent=27 // pred_fallthru
          _
        %s224 = sand.u32 %s52, 1
        %s225 = scalar_lea.sflag [#allocation4], %s224
        %s226 = sand.u32 %s52, 1
        %s227 = smul.addr %s226, 128
        %s228 = scalar_lea.vmem [#allocation3], %s227
        %p229 = pneg %p65
        %p230 = pneg %p62
        %p231 = pneg %p91
        %p232 = pneg %p88
        %p233 = pneg %p121
        %p234 = pneg %p118
        %s235 = sand.u32 %s108, 1
        %s236 = scalar_lea.sflag [#allocation5], %s235
        %s237 = sand.u32 %s108, 1
        %s238 = smul.addr %s237, 128
        %s239 = scalar_lea.vmem [#allocation8], %s238
        %p240 = pneg %p149
        %p241 = pneg %p146
        %s242 = sand.u32 %s136, 1
        %s243 = scalar_lea.sflag [#allocation10], %s242
        %s244 = sand.u32 %s136, 1
        %s245 = smul.addr %s244, 2
        %s246 = scalar_lea.vmem [#allocation9], %s245
        %s247 = smul.u32 32, %s32
        %s249 = smul.u32 %s32, 256
        %s250 = sshra.s32 %s249, 3
        %s251 = sand.u32 %s249, 7
        %s252 = smul.addr %s250, 4
        %s253 = scalar_lea.vmem %s215, %s252 [#allocation3]
        %v254 = vld [vmem:[%s253] sm:$0xf]
        %v255 = vld [vmem:[%s253 + $0x4] sm:$0xf]
        %v256 = vld [vmem:[%s253 + $0x8] sm:$0xf]
        %v257 = vld [vmem:[%s253 + $0xc] sm:$0xf]
        %v258 = vld [vmem:[%s253 + $0x10] sm:$0xf]
        %v259 = vld [vmem:[%s253 + $0x14] sm:$0xf]
        %v260 = vld [vmem:[%s253 + $0x18] sm:$0xf]
        %v261 = vld [vmem:[%s253 + $0x1c] sm:$0xf]
        %v262 = vld [vmem:[%s253 + $0x20] sm:$0xf]
        %v263 = vld [vmem:[%s253 + $0x24] sm:$0xf]
        %v264 = vld [vmem:[%s253 + $0x28] sm:$0xf]
        %v265 = vld [vmem:[%s253 + $0x2c] sm:$0xf]
        %v266 = vld [vmem:[%s253 + $0x30] sm:$0xf]
        %v267 = vld [vmem:[%s253 + $0x34] sm:$0xf]
        %v268 = vld [vmem:[%s253 + $0x38] sm:$0xf]
        %v269 = vld [vmem:[%s253 + $0x3c] sm:$0xf]
        %v270 = vld [vmem:[%s253 + $0x40] sm:$0xf]
        %v271 = vld [vmem:[%s253 + $0x44] sm:$0xf]
        %v272 = vld [vmem:[%s253 + $0x48] sm:$0xf]
        %v273 = vld [vmem:[%s253 + $0x4c] sm:$0xf]
        %v274 = vld [vmem:[%s253 + $0x50] sm:$0xf]
        %v275 = vld [vmem:[%s253 + $0x54] sm:$0xf]
        %v276 = vld [vmem:[%s253 + $0x58] sm:$0xf]
        %v277 = vld [vmem:[%s253 + $0x5c] sm:$0xf]
        %v278 = vld [vmem:[%s253 + $0x60] sm:$0xf]
        %v279 = vld [vmem:[%s253 + $0x64] sm:$0xf]
        %v280 = vld [vmem:[%s253 + $0x68] sm:$0xf]
        %v281 = vld [vmem:[%s253 + $0x6c] sm:$0xf]
        %v282 = vld [vmem:[%s253 + $0x70] sm:$0xf]
        %v283 = vld [vmem:[%s253 + $0x74] sm:$0xf]
        %v284 = vld [vmem:[%s253 + $0x78] sm:$0xf]
        %v285 = vld [vmem:[%s253 + $0x7c] sm:$0xf]
        %v286 = vld [vmem:[#allocation6] sm:$0xf]
        %v287 = vld [vmem:[#allocation6 + $0x4] sm:$0xf]
        %v288 = vld [vmem:[#allocation6 + $0x8] sm:$0xf]
        %v289 = vld [vmem:[#allocation6 + $0xc] sm:$0xf]
        %v290 = vld [vmem:[#allocation6 + $0x10] sm:$0xf]
        %v291 = vld [vmem:[#allocation6 + $0x14] sm:$0xf]
        %v292 = vld [vmem:[#allocation6 + $0x18] sm:$0xf]
        %v293 = vld [vmem:[#allocation6 + $0x1c] sm:$0xf]
        %v294 = vld [vmem:[#allocation6 + $0x20] sm:$0xf]
        %v295 = vld [vmem:[#allocation6 + $0x24] sm:$0xf]
        %v296 = vld [vmem:[#allocation6 + $0x28] sm:$0xf]
        %v297 = vld [vmem:[#allocation6 + $0x2c] sm:$0xf]
        %v298 = vld [vmem:[#allocation6 + $0x30] sm:$0xf]
        %v299 = vld [vmem:[#allocation6 + $0x34] sm:$0xf]
        %v300 = vld [vmem:[#allocation6 + $0x38] sm:$0xf]
        %v301 = vld [vmem:[#allocation6 + $0x3c] sm:$0xf]
        %v334 = vunpack.c.l.b16 %v254
        %v335 = vunpack.c.l.b16 %v255
        %v336 = vunpack.c.l.b16 %v256
        %v337 = vunpack.c.l.b16 %v257
        %v338 = vunpack.c.l.b16 %v258
        %v339 = vunpack.c.l.b16 %v259
        %v340 = vunpack.c.l.b16 %v260
        %v341 = vunpack.c.l.b16 %v261
        %v342 = vunpack.c.l.b16 %v262
        %v343 = vunpack.c.l.b16 %v263
        %v344 = vunpack.c.l.b16 %v264
        %v345 = vunpack.c.l.b16 %v265
        %v346 = vunpack.c.l.b16 %v266
        %v347 = vunpack.c.l.b16 %v267
        %v348 = vunpack.c.l.b16 %v268
        %v349 = vunpack.c.l.b16 %v269
        %v350 = vunpack.c.l.b16 %v270
        %v351 = vunpack.c.l.b16 %v271
        %v352 = vunpack.c.l.b16 %v272
        %v353 = vunpack.c.l.b16 %v273
        %v354 = vunpack.c.l.b16 %v274
        %v355 = vunpack.c.l.b16 %v275
        %v356 = vunpack.c.l.b16 %v276
        %v357 = vunpack.c.l.b16 %v277
        %v358 = vunpack.c.l.b16 %v278
        %v359 = vunpack.c.l.b16 %v279
        %v360 = vunpack.c.l.b16 %v280
        %v361 = vunpack.c.l.b16 %v281
        %v362 = vunpack.c.l.b16 %v282
        %v363 = vunpack.c.l.b16 %v283
        %v364 = vunpack.c.l.b16 %v284
        %v365 = vunpack.c.l.b16 %v285
        %v366 = vpack.c.b16 %v335, %v334
        %v367 = vpack.c.b16 %v337, %v336
        %v368 = vpack.c.b16 %v339, %v338
        %v369 = vpack.c.b16 %v341, %v340
        %v370 = vpack.c.b16 %v343, %v342
        %v371 = vpack.c.b16 %v345, %v344
        %v372 = vpack.c.b16 %v347, %v346
        %v373 = vpack.c.b16 %v349, %v348
        %v374 = vpack.c.b16 %v351, %v350
        %v375 = vpack.c.b16 %v353, %v352
        %v376 = vpack.c.b16 %v355, %v354
        %v377 = vpack.c.b16 %v357, %v356
        %v378 = vpack.c.b16 %v359, %v358
        %v379 = vpack.c.b16 %v361, %v360
        %v380 = vpack.c.b16 %v363, %v362
        %v381 = vpack.c.b16 %v365, %v364
        %v414 = vunpack.c.l.b16 %v286
        %v415 = vunpack.c.l.b16 %v287
        %v416 = vunpack.c.l.b16 %v288
        %v417 = vunpack.c.l.b16 %v289
        %v418 = vunpack.c.l.b16 %v290
        %v419 = vunpack.c.l.b16 %v291
        %v420 = vunpack.c.l.b16 %v292
        %v421 = vunpack.c.l.b16 %v293
        %v422 = vunpack.c.l.b16 %v294
        %v423 = vunpack.c.l.b16 %v295
        %v424 = vunpack.c.l.b16 %v296
        %v425 = vunpack.c.l.b16 %v297
        %v426 = vunpack.c.l.b16 %v298
        %v427 = vunpack.c.l.b16 %v299
        %v428 = vunpack.c.l.b16 %v300
        %v429 = vunpack.c.l.b16 %v301
        %v430 = vpack.c.b16 %v415, %v414
        %v431 = vpack.c.b16 %v417, %v416
        %v432 = vpack.c.b16 %v419, %v418
        %v433 = vpack.c.b16 %v421, %v420
        %v434 = vpack.c.b16 %v423, %v422
        %v435 = vpack.c.b16 %v425, %v424
        %v436 = vpack.c.b16 %v427, %v426
        %v437 = vpack.c.b16 %v429, %v428
        %446 = vmatprep.subr.bf16.mxu0 0
        %447 = vmatpush1.bf16.msra.mxu0 %v430
        %448 = vmatprep.subr.bf16.mxu0 0
        %449 = vmatpush1.bf16.msra.mxu0 %v431
        %450 = vmatprep.subr.bf16.mxu0 0
        %451 = vmatpush1.bf16.msra.mxu0 %v432
        %452 = vmatprep.subr.bf16.mxu0 0
        %453 = vmatpush1.bf16.msra.mxu0 %v433
        %454 = vmatprep.subr.bf16.mxu0 0
        %455 = vmatpush1.bf16.msra.mxu0 %v434
        %456 = vmatprep.subr.bf16.mxu0 0
        %457 = vmatpush1.bf16.msra.mxu0 %v435
        %458 = vmatprep.subr.bf16.mxu0 0
        %459 = vmatpush1.bf16.msra.mxu0 %v436
        %460 = vmatprep.subr.bf16.mxu0 0
        %461 = vmatpush1.bf16.msra.mxu0 %v437
        %462 = vmatprep.subr.bf16.mxu0 0
        %463 = vmatpush1.bf16.msra.mxu0 0
        %464 = vmatprep.subr.bf16.mxu0 0
        %465 = vmatpush1.bf16.msra.mxu0 0
        %466 = vmatprep.subr.bf16.mxu0 0
        %467 = vmatpush1.bf16.msra.mxu0 0
        %468 = vmatprep.subr.bf16.mxu0 0
        %469 = vmatpush1.bf16.msra.mxu0 0
        %470 = vmatprep.subr.bf16.mxu0 0
        %471 = vmatpush1.bf16.msra.mxu0 0
        %472 = vmatprep.subr.bf16.mxu0 0
        %473 = vmatpush1.bf16.msra.mxu0 0
        %474 = vmatprep.subr.bf16.mxu0 0
        %475 = vmatpush1.bf16.msra.mxu0 0
        %476 = vmatprep.subr.bf16.mxu0 0
        %477 = vmatpush1.bf16.msra.mxu0 0
        %478 = vmatprep.mubr.bf16.mxu0 0
        %479 = vmatmul.mubr.bf16.gmra.mrb[0].mxu0 %v366
        %v480 = vpop.f32.mrb[0].mxu0
        %v481 = vadd.f32 0.0, %v480
        %v482 = vpop.f32.mrb[0].mxu0
        %v483 = vpop.f32.mrb[0].mxu0
        %v484 = vadd.f32 0.0, %v483
        %v485 = vpop.f32.mrb[0].mxu0
        %486 = vmatprep.mubr.bf16.mxu0 0
        %487 = vmatmul.mubr.bf16.gmra.mrb[0].mxu0 %v367
        %v488 = vpop.f32.mrb[0].mxu0
        %v489 = vadd.f32 0.0, %v488
        %v490 = vpop.f32.mrb[0].mxu0
        %v491 = vpop.f32.mrb[0].mxu0
        %v492 = vadd.f32 0.0, %v491
        %v493 = vpop.f32.mrb[0].mxu0
        %494 = vmatprep.mubr.bf16.mxu0 0
        %495 = vmatmul.mubr.bf16.gmra.mrb[0].mxu0 %v368
        %v496 = vpop.f32.mrb[0].mxu0
        %v497 = vadd.f32 0.0, %v496
        %v498 = vpop.f32.mrb[0].mxu0
        %v499 = vpop.f32.mrb[0].mxu0
        %v500 = vadd.f32 0.0, %v499
        %v501 = vpop.f32.mrb[0].mxu0
        %502 = vmatprep.mubr.bf16.mxu0 0
        %503 = vmatmul.mubr.bf16.gmra.mrb[0].mxu0 %v369
        %v504 = vpop.f32.mrb[0].mxu0
        %v505 = vadd.f32 0.0, %v504
        %v506 = vpop.f32.mrb[0].mxu0
        %v507 = vpop.f32.mrb[0].mxu0
        %v508 = vadd.f32 0.0, %v507
        %v509 = vpop.f32.mrb[0].mxu0
        %510 = vmatprep.mubr.bf16.mxu0 0
        %511 = vmatmul.mubr.bf16.gmra.mrb[0].mxu0 %v370
        %v512 = vpop.f32.mrb[0].mxu0
        %v513 = vadd.f32 0.0, %v512
        %v514 = vpop.f32.mrb[0].mxu0
        %v515 = vpop.f32.mrb[0].mxu0
        %v516 = vadd.f32 0.0, %v515
        %v517 = vpop.f32.mrb[0].mxu0
        %518 = vmatprep.mubr.bf16.mxu0 0
        %519 = vmatmul.mubr.bf16.gmra.mrb[0].mxu0 %v371
        %v520 = vpop.f32.mrb[0].mxu0
        %v521 = vadd.f32 0.0, %v520
        %v522 = vpop.f32.mrb[0].mxu0
        %v523 = vpop.f32.mrb[0].mxu0
        %v524 = vadd.f32 0.0, %v523
        %v525 = vpop.f32.mrb[0].mxu0
        %526 = vmatprep.mubr.bf16.mxu0 0
        %527 = vmatmul.mubr.bf16.gmra.mrb[0].mxu0 %v372
        %v528 = vpop.f32.mrb[0].mxu0
        %v529 = vadd.f32 0.0, %v528
        %v530 = vpop.f32.mrb[0].mxu0
        %v531 = vpop.f32.mrb[0].mxu0
        %v532 = vadd.f32 0.0, %v531
        %v533 = vpop.f32.mrb[0].mxu0
        %534 = vmatprep.mubr.bf16.mxu0 0
        %535 = vmatmul.mubr.bf16.gmra.mrb[0].mxu0 %v373
        %v536 = vpop.f32.mrb[0].mxu0
        %v537 = vadd.f32 0.0, %v536
        %v538 = vpop.f32.mrb[0].mxu0
        %v539 = vpop.f32.mrb[0].mxu0
        %v540 = vadd.f32 0.0, %v539
        %v541 = vpop.f32.mrb[0].mxu0
        %542 = vmatprep.mubr.bf16.mxu0 0
        %543 = vmatmul.mubr.bf16.gmra.mrb[0].mxu0 %v374
        %v544 = vpop.f32.mrb[0].mxu0
        %v545 = vadd.f32 0.0, %v544
        %v546 = vpop.f32.mrb[0].mxu0
        %v547 = vpop.f32.mrb[0].mxu0
        %v548 = vadd.f32 0.0, %v547
        %v549 = vpop.f32.mrb[0].mxu0
        %550 = vmatprep.mubr.bf16.mxu0 0
        %551 = vmatmul.mubr.bf16.gmra.mrb[0].mxu0 %v375
        %v552 = vpop.f32.mrb[0].mxu0
        %v553 = vadd.f32 0.0, %v552
        %v554 = vpop.f32.mrb[0].mxu0
        %v555 = vpop.f32.mrb[0].mxu0
        %v556 = vadd.f32 0.0, %v555
        %v557 = vpop.f32.mrb[0].mxu0
        %558 = vmatprep.mubr.bf16.mxu0 0
        %559 = vmatmul.mubr.bf16.gmra.mrb[0].mxu0 %v376
        %v560 = vpop.f32.mrb[0].mxu0
        %v561 = vadd.f32 0.0, %v560
        %v562 = vpop.f32.mrb[0].mxu0
        %v563 = vpop.f32.mrb[0].mxu0
        %v564 = vadd.f32 0.0, %v563
        %v565 = vpop.f32.mrb[0].mxu0
        %566 = vmatprep.mubr.bf16.mxu0 0
        %567 = vmatmul.mubr.bf16.gmra.mrb[0].mxu0 %v377
        %v568 = vpop.f32.mrb[0].mxu0
        %v569 = vadd.f32 0.0, %v568
        %v570 = vpop.f32.mrb[0].mxu0
        %v571 = vpop.f32.mrb[0].mxu0
        %v572 = vadd.f32 0.0, %v571
        %v573 = vpop.f32.mrb[0].mxu0
        %574 = vmatprep.mubr.bf16.mxu0 0
        %575 = vmatmul.mubr.bf16.gmra.mrb[0].mxu0 %v378
        %v576 = vpop.f32.mrb[0].mxu0
        %v577 = vadd.f32 0.0, %v576
        %v578 = vpop.f32.mrb[0].mxu0
        %v579 = vpop.f32.mrb[0].mxu0
        %v580 = vadd.f32 0.0, %v579
        %v581 = vpop.f32.mrb[0].mxu0
        %582 = vmatprep.mubr.bf16.mxu0 0
        %583 = vmatmul.mubr.bf16.gmra.mrb[0].mxu0 %v379
        %v584 = vpop.f32.mrb[0].mxu0
        %v585 = vadd.f32 0.0, %v584
        %v586 = vpop.f32.mrb[0].mxu0
        %v587 = vpop.f32.mrb[0].mxu0
        %v588 = vadd.f32 0.0, %v587
        %v589 = vpop.f32.mrb[0].mxu0
        %590 = vmatprep.mubr.bf16.mxu0 0
        %591 = vmatmul.mubr.bf16.gmra.mrb[0].mxu0 %v380
        %v592 = vpop.f32.mrb[0].mxu0
        %v593 = vadd.f32 0.0, %v592
        %v594 = vpop.f32.mrb[0].mxu0
        %v595 = vpop.f32.mrb[0].mxu0
        %v596 = vadd.f32 0.0, %v595
        %v597 = vpop.f32.mrb[0].mxu0
        %598 = vmatprep.mubr.bf16.mxu0 0
        %599 = vmatmul.mubr.bf16.gmra.mrb[0].mxu0 %v381
        %v600 = vpop.f32.mrb[0].mxu0
        %v601 = vadd.f32 0.0, %v600
        %v602 = vpop.f32.mrb[0].mxu0
        %v603 = vpop.f32.mrb[0].mxu0
        %v604 = vadd.f32 0.0, %v603
        %v605 = vpop.f32.mrb[0].mxu0
        %606 = vdwg.mxu0
        %607 = vst [vmem:[#allocation2] sm:$0xff] %v481
        %608 = vst [vmem:[#allocation2 + $0x8] sm:$0xff] %v484
        %609 = vst [vmem:[#allocation2 + $0x10] sm:$0xff] %v489
        %610 = vst [vmem:[#allocation2 + $0x18] sm:$0xff] %v492
        %611 = vst [vmem:[#allocation2 + $0x20] sm:$0xff] %v497
        %612 = vst [vmem:[#allocation2 + $0x28] sm:$0xff] %v500
        %613 = vst [vmem:[#allocation2 + $0x30] sm:$0xff] %v505
        %614 = vst [vmem:[#allocation2 + $0x38] sm:$0xff] %v508
        %615 = vst [vmem:[#allocation2 + $0x40] sm:$0xff] %v513
        %616 = vst [vmem:[#allocation2 + $0x48] sm:$0xff] %v516
        %617 = vst [vmem:[#allocation2 + $0x50] sm:$0xff] %v521
        %618 = vst [vmem:[#allocation2 + $0x58] sm:$0xff] %v524
        %619 = vst [vmem:[#allocation2 + $0x60] sm:$0xff] %v529
        %620 = vst [vmem:[#allocation2 + $0x68] sm:$0xff] %v532
        %621 = vst [vmem:[#allocation2 + $0x70] sm:$0xff] %v537
        %622 = vst [vmem:[#allocation2 + $0x78] sm:$0xff] %v540
        %623 = vst [vmem:[#allocation2 + $0x80] sm:$0xff] %v545
        %624 = vst [vmem:[#allocation2 + $0x88] sm:$0xff] %v548
        %625 = vst [vmem:[#allocation2 + $0x90] sm:$0xff] %v553
        %626 = vst [vmem:[#allocation2 + $0x98] sm:$0xff] %v556
        %627 = vst [vmem:[#allocation2 + $0xa0] sm:$0xff] %v561
        %628 = vst [vmem:[#allocation2 + $0xa8] sm:$0xff] %v564
        %629 = vst [vmem:[#allocation2 + $0xb0] sm:$0xff] %v569
        %630 = vst [vmem:[#allocation2 + $0xb8] sm:$0xff] %v572
        %631 = vst [vmem:[#allocation2 + $0xc0] sm:$0xff] %v577
        %632 = vst [vmem:[#allocation2 + $0xc8] sm:$0xff] %v580
        %633 = vst [vmem:[#allocation2 + $0xd0] sm:$0xff] %v585
        %634 = vst [vmem:[#allocation2 + $0xd8] sm:$0xff] %v588
        %635 = vst [vmem:[#allocation2 + $0xe0] sm:$0xff] %v593
        %636 = vst [vmem:[#allocation2 + $0xe8] sm:$0xff] %v596
        %637 = vst [vmem:[#allocation2 + $0xf0] sm:$0xff] %v601
        %638 = vst [vmem:[#allocation2 + $0xf8] sm:$0xff] %v604
        %v639 = vld [vmem:[#allocation2] sm:$0xff]
        %v640 = vld [vmem:[#allocation2 + $0x8] sm:$0xff]
        %v641 = vld [vmem:[#allocation2 + $0x10] sm:$0xff]
        %v642 = vld [vmem:[#allocation2 + $0x18] sm:$0xff]
        %v643 = vld [vmem:[#allocation2 + $0x20] sm:$0xff]
        %v644 = vld [vmem:[#allocation2 + $0x28] sm:$0xff]
        %v645 = vld [vmem:[#allocation2 + $0x30] sm:$0xff]
        %v646 = vld [vmem:[#allocation2 + $0x38] sm:$0xff]
        %v647 = vld [vmem:[#allocation2 + $0x40] sm:$0xff]
        %v648 = vld [vmem:[#allocation2 + $0x48] sm:$0xff]
        %v649 = vld [vmem:[#allocation2 + $0x50] sm:$0xff]
        %v650 = vld [vmem:[#allocation2 + $0x58] sm:$0xff]
        %v651 = vld [vmem:[#allocation2 + $0x60] sm:$0xff]
        %v652 = vld [vmem:[#allocation2 + $0x68] sm:$0xff]
        %v653 = vld [vmem:[#allocation2 + $0x70] sm:$0xff]
        %v654 = vld [vmem:[#allocation2 + $0x78] sm:$0xff]
        %v655 = vld [vmem:[#allocation2 + $0x80] sm:$0xff]
        %v656 = vld [vmem:[#allocation2 + $0x88] sm:$0xff]
        %v657 = vld [vmem:[#allocation2 + $0x90] sm:$0xff]
        %v658 = vld [vmem:[#allocation2 + $0x98] sm:$0xff]
        %v659 = vld [vmem:[#allocation2 + $0xa0] sm:$0xff]
        %v660 = vld [vmem:[#allocation2 + $0xa8] sm:$0xff]
        %v661 = vld [vmem:[#allocation2 + $0xb0] sm:$0xff]
        %v662 = vld [vmem:[#allocation2 + $0xb8] sm:$0xff]
        %v663 = vld [vmem:[#allocation2 + $0xc0] sm:$0xff]
        %v664 = vld [vmem:[#allocation2 + $0xc8] sm:$0xff]
        %v665 = vld [vmem:[#allocation2 + $0xd0] sm:$0xff]
        %v666 = vld [vmem:[#allocation2 + $0xd8] sm:$0xff]
        %v667 = vld [vmem:[#allocation2 + $0xe0] sm:$0xff]
        %v668 = vld [vmem:[#allocation2 + $0xe8] sm:$0xff]
        %v669 = vld [vmem:[#allocation2 + $0xf0] sm:$0xff]
        %v670 = vld [vmem:[#allocation2 + $0xf8] sm:$0xff]
        %v671 = vpack.c.bf16 %v640, %v639
        %v672 = vpack.c.bf16 %v642, %v641
        %v673 = vpack.c.bf16 %v644, %v643
        %v674 = vpack.c.bf16 %v646, %v645
        %v675 = vpack.c.bf16 %v648, %v647
        %v676 = vpack.c.bf16 %v650, %v649
        %v677 = vpack.c.bf16 %v652, %v651
        %v678 = vpack.c.bf16 %v654, %v653
        %v679 = vpack.c.bf16 %v656, %v655
        %v680 = vpack.c.bf16 %v658, %v657
        %v681 = vpack.c.bf16 %v660, %v659
        %v682 = vpack.c.bf16 %v662, %v661
        %v683 = vpack.c.bf16 %v664, %v663
        %v684 = vpack.c.bf16 %v666, %v665
        %v685 = vpack.c.bf16 %v668, %v667
        %v686 = vpack.c.bf16 %v670, %v669
        %v703 = vunpack.c.l.b16 %v671
        %v704 = vunpack.c.h.b16 %v671
        %v705 = vunpack.c.l.b16 %v672
        %v706 = vunpack.c.h.b16 %v672
        %v707 = vunpack.c.l.b16 %v673
        %v708 = vunpack.c.h.b16 %v673
        %v709 = vunpack.c.l.b16 %v674
        %v710 = vunpack.c.h.b16 %v674
        %v711 = vunpack.c.l.b16 %v675
        %v712 = vunpack.c.h.b16 %v675
        %v713 = vunpack.c.l.b16 %v676
        %v714 = vunpack.c.h.b16 %v676
        %v715 = vunpack.c.l.b16 %v677
        %v716 = vunpack.c.h.b16 %v677
        %v717 = vunpack.c.l.b16 %v678
        %v718 = vunpack.c.h.b16 %v678
        %v719 = vunpack.c.l.b16 %v679
        %v720 = vunpack.c.h.b16 %v679
        %v721 = vunpack.c.l.b16 %v680
        %v722 = vunpack.c.h.b16 %v680
        %v723 = vunpack.c.l.b16 %v681
        %v724 = vunpack.c.h.b16 %v681
        %v725 = vunpack.c.l.b16 %v682
        %v726 = vunpack.c.h.b16 %v682
        %v727 = vunpack.c.l.b16 %v683
        %v728 = vunpack.c.h.b16 %v683
        %v729 = vunpack.c.l.b16 %v684
        %v730 = vunpack.c.h.b16 %v684
        %v731 = vunpack.c.l.b16 %v685
        %v732 = vunpack.c.h.b16 %v685
        %v733 = vunpack.c.l.b16 %v686
        %v734 = vunpack.c.h.b16 %v686
        %v735 = vpack.c.b16 %v703, %v703
        %v736 = vpack.c.b16 %v704, %v704
        %v737 = vpack.c.b16 %v705, %v705
        %v738 = vpack.c.b16 %v706, %v706
        %v739 = vpack.c.b16 %v707, %v707
        %v740 = vpack.c.b16 %v708, %v708
        %v741 = vpack.c.b16 %v709, %v709
        %v742 = vpack.c.b16 %v710, %v710
        %v743 = vpack.c.b16 %v711, %v711
        %v744 = vpack.c.b16 %v712, %v712
        %v745 = vpack.c.b16 %v713, %v713
        %v746 = vpack.c.b16 %v714, %v714
        %v747 = vpack.c.b16 %v715, %v715
        %v748 = vpack.c.b16 %v716, %v716
        %v749 = vpack.c.b16 %v717, %v717
        %v750 = vpack.c.b16 %v718, %v718
        %v751 = vpack.c.b16 %v719, %v719
        %v752 = vpack.c.b16 %v720, %v720
        %v753 = vpack.c.b16 %v721, %v721
        %v754 = vpack.c.b16 %v722, %v722
        %v755 = vpack.c.b16 %v723, %v723
        %v756 = vpack.c.b16 %v724, %v724
        %v757 = vpack.c.b16 %v725, %v725
        %v758 = vpack.c.b16 %v726, %v726
        %v759 = vpack.c.b16 %v727, %v727
        %v760 = vpack.c.b16 %v728, %v728
        %v761 = vpack.c.b16 %v729, %v729
        %v762 = vpack.c.b16 %v730, %v730
        %v763 = vpack.c.b16 %v731, %v731
        %v764 = vpack.c.b16 %v732, %v732
        %v765 = vpack.c.b16 %v733, %v733
        %v766 = vpack.c.b16 %v734, %v734
        %799 = vst [vmem:[%s239] sm:$0xf] %v735
        %800 = vst [vmem:[%s239 + $0x4] sm:$0xf] %v736
        %801 = vst [vmem:[%s239 + $0x8] sm:$0xf] %v737
        %802 = vst [vmem:[%s239 + $0xc] sm:$0xf] %v738
        %803 = vst [vmem:[%s239 + $0x10] sm:$0xf] %v739
        %804 = vst [vmem:[%s239 + $0x14] sm:$0xf] %v740
        %805 = vst [vmem:[%s239 + $0x18] sm:$0xf] %v741
        %806 = vst [vmem:[%s239 + $0x1c] sm:$0xf] %v742
        %807 = vst [vmem:[%s239 + $0x20] sm:$0xf] %v743
        %808 = vst [vmem:[%s239 + $0x24] sm:$0xf] %v744
        %809 = vst [vmem:[%s239 + $0x28] sm:$0xf] %v745
        %810 = vst [vmem:[%s239 + $0x2c] sm:$0xf] %v746
        %811 = vst [vmem:[%s239 + $0x30] sm:$0xf] %v747
        %812 = vst [vmem:[%s239 + $0x34] sm:$0xf] %v748
        %813 = vst [vmem:[%s239 + $0x38] sm:$0xf] %v749
        %814 = vst [vmem:[%s239 + $0x3c] sm:$0xf] %v750
        %815 = vst [vmem:[%s239 + $0x40] sm:$0xf] %v751
        %816 = vst [vmem:[%s239 + $0x44] sm:$0xf] %v752
        %817 = vst [vmem:[%s239 + $0x48] sm:$0xf] %v753
        %818 = vst [vmem:[%s239 + $0x4c] sm:$0xf] %v754
        %819 = vst [vmem:[%s239 + $0x50] sm:$0xf] %v755
        %820 = vst [vmem:[%s239 + $0x54] sm:$0xf] %v756
        %821 = vst [vmem:[%s239 + $0x58] sm:$0xf] %v757
        %822 = vst [vmem:[%s239 + $0x5c] sm:$0xf] %v758
        %823 = vst [vmem:[%s239 + $0x60] sm:$0xf] %v759
        %824 = vst [vmem:[%s239 + $0x64] sm:$0xf] %v760
        %825 = vst [vmem:[%s239 + $0x68] sm:$0xf] %v761
        %826 = vst [vmem:[%s239 + $0x6c] sm:$0xf] %v762
        %827 = vst [vmem:[%s239 + $0x70] sm:$0xf] %v763
        %828 = vst [vmem:[%s239 + $0x74] sm:$0xf] %v764
        %829 = vst [vmem:[%s239 + $0x78] sm:$0xf] %v765
        %830 = vst [vmem:[%s239 + $0x7c] sm:$0xf] %v766
        %v831 = vadd.f32 %v639, %v640
        %v832 = vadd.f32 %v831, %v641
        %v833 = vadd.f32 %v832, %v642
        %v834 = vadd.f32 %v833, %v643
        %v835 = vadd.f32 %v834, %v644
        %v836 = vadd.f32 %v835, %v645
        %v837 = vadd.f32 %v836, %v646
        %v838 = vadd.f32 %v837, %v647
        %v839 = vadd.f32 %v838, %v648
        %v840 = vadd.f32 %v839, %v649
        %v841 = vadd.f32 %v840, %v650
        %v842 = vadd.f32 %v841, %v651
        %v843 = vadd.f32 %v842, %v652
        %v844 = vadd.f32 %v843, %v653
        %v845 = vadd.f32 %v844, %v654
        %v846 = vadd.f32 %v845, %v655
        %v847 = vadd.f32 %v846, %v656
        %v848 = vadd.f32 %v847, %v657
        %v849 = vadd.f32 %v848, %v658
        %v850 = vadd.f32 %v849, %v659
        %v851 = vadd.f32 %v850, %v660
        %v852 = vadd.f32 %v851, %v661
        %v853 = vadd.f32 %v852, %v662
        %v854 = vadd.f32 %v853, %v663
        %v855 = vadd.f32 %v854, %v664
        %v856 = vadd.f32 %v855, %v665
        %v857 = vadd.f32 %v856, %v666
        %v858 = vadd.f32 %v857, %v667
        %v859 = vadd.f32 %v858, %v668
        %v860 = vadd.f32 %v859, %v669
        %v861 = vadd.f32 %v860, %v670
        %v862 = vrot.slane %v861, 4
        %v863 = vadd.f32 %v861, %v862
        %v864 = vrot.slane %v863, 2
        %v865 = vadd.f32 %v863, %v864
        %v866 = vrot.slane %v865, 1
        %v867 = vadd.f32 %v865, %v866
        %v868 = vmul.f32 %v639, %v639
        %v869 = vmul.f32 %v640, %v640
        %v870 = vmul.f32 %v641, %v641
        %v871 = vmul.f32 %v642, %v642
        %v872 = vmul.f32 %v643, %v643
        %v873 = vmul.f32 %v644, %v644
        %v874 = vmul.f32 %v645, %v645
        %v875 = vmul.f32 %v646, %v646
        %v876 = vmul.f32 %v647, %v647
        %v877 = vmul.f32 %v648, %v648
        %v878 = vmul.f32 %v649, %v649
        %v879 = vmul.f32 %v650, %v650
        %v880 = vmul.f32 %v651, %v651
        %v881 = vmul.f32 %v652, %v652
        %v882 = vmul.f32 %v653, %v653
        %v883 = vmul.f32 %v654, %v654
        %v884 = vmul.f32 %v655, %v655
        %v885 = vmul.f32 %v656, %v656
        %v886 = vmul.f32 %v657, %v657
        %v887 = vmul.f32 %v658, %v658
        %v888 = vmul.f32 %v659, %v659
        %v889 = vmul.f32 %v660, %v660
        %v890 = vmul.f32 %v661, %v661
        %v891 = vmul.f32 %v662, %v662
        %v892 = vmul.f32 %v663, %v663
        %v893 = vmul.f32 %v664, %v664
        %v894 = vmul.f32 %v665, %v665
        %v895 = vmul.f32 %v666, %v666
        %v896 = vmul.f32 %v667, %v667
        %v897 = vmul.f32 %v668, %v668
        %v898 = vmul.f32 %v669, %v669
        %v899 = vmul.f32 %v670, %v670
        %v900 = vadd.f32 %v868, %v869
        %v901 = vadd.f32 %v900, %v870
        %v902 = vadd.f32 %v901, %v871
        %v903 = vadd.f32 %v902, %v872
        %v904 = vadd.f32 %v903, %v873
        %v905 = vadd.f32 %v904, %v874
        %v906 = vadd.f32 %v905, %v875
        %v907 = vadd.f32 %v906, %v876
        %v908 = vadd.f32 %v907, %v877
        %v909 = vadd.f32 %v908, %v878
        %v910 = vadd.f32 %v909, %v879
        %v911 = vadd.f32 %v910, %v880
        %v912 = vadd.f32 %v911, %v881
        %v913 = vadd.f32 %v912, %v882
        %v914 = vadd.f32 %v913, %v883
        %v915 = vadd.f32 %v914, %v884
        %v916 = vadd.f32 %v915, %v885
        %v917 = vadd.f32 %v916, %v886
        %v918 = vadd.f32 %v917, %v887
        %v919 = vadd.f32 %v918, %v888
        %v920 = vadd.f32 %v919, %v889
        %v921 = vadd.f32 %v920, %v890
        %v922 = vadd.f32 %v921, %v891
        %v923 = vadd.f32 %v922, %v892
        %v924 = vadd.f32 %v923, %v893
        %v925 = vadd.f32 %v924, %v894
        %v926 = vadd.f32 %v925, %v895
        %v927 = vadd.f32 %v926, %v896
        %v928 = vadd.f32 %v927, %v897
        %v929 = vadd.f32 %v928, %v898
        %v930 = vadd.f32 %v929, %v899
        %v931 = vrot.slane %v930, 4
        %v932 = vadd.f32 %v930, %v931
        %v933 = vrot.slane %v932, 2
        %v934 = vadd.f32 %v932, %v933
        %v935 = vrot.slane %v934, 1
        %v936 = vadd.f32 %v934, %v935
        %vm937 = vcmask 1040384
        %v938 = vsel %vm937, %v867, %v936
        %p939 = scmp.eq.s32.totalorder %s32, 0
        // Predicated region
        $region37: #{cnn_block_forward.2} parent=27 // pred_check
          %p940 = pneg %p939
        $region38: #{cnn_block_forward.2} parent=27 // pred_check_branch
          %942 = sbr.rel (%p940) target = $region40
        $region39: #{cnn_block_forward.2} parent=27 // pred_region
          %943 = vst [vmem:[%s246] sm:$0x3] %v938
        $region40: #{cnn_block_forward.2} parent=27 // pred_fallthru
          _
        %p944 = scmp.gt.s32.totalorder %s32, 0
        // Predicated region
        $region41: #{cnn_block_forward.2} parent=27 // pred_check
          %p945 = pneg %p944
        $region42: #{cnn_block_forward.2} parent=27 // pred_check_branch
          %947 = sbr.rel (%p945) target = $region44
        $region43: #{cnn_block_forward.2} parent=27 // pred_region
          %v948 = vld [vmem:[%s246] sm:$0x3]
          %v949 = vadd.f32 %v948, %v938
          %950 = vst [vmem:[%s246] sm:$0x3] %v949
        $region44: #{cnn_block_forward.2} parent=27 // pred_fallthru
          _
        %s951 = sand.u32 %s108, 1
        %s952 = scalar_lea.sflag [#allocation5], %s951
        %s953 = sand.u32 %s108, 1
        %s954 = smul.addr %s953, 128
        %s955 = scalar_lea.vmem [#allocation8], %s954
        %s956 = sand.u32 %s136, 1
        %s957 = scalar_lea.sflag [#allocation10], %s956
        %s958 = sand.u32 %s136, 1
        %s959 = smul.addr %s958, 2
        %s960 = scalar_lea.vmem [#allocation9], %s959
        // Predicated region
        $region45: #{cnn_block_forward.2} parent=27 // pred_check
          %p961 = pneg %p118
        $region46: #{cnn_block_forward.2} parent=27 // pred_check_branch
          %963 = sbr.rel (%p961) target = $region48
        $region47: #{cnn_block_forward.2} parent=27 // pred_region
          %s964 = smul.u32 32, %s32
          %s966 = ssub.s32 2048, 2048
          %967 = vsyncadd %s952, %s966
          %s968 = sadd.s32 %s31, %s964
          %s969 = smul.addr %s30, 32
          %s970 = sadd.s32 %s968, %s969
          %s971 = smul.addr %s970, 64
          %s972 = scalar_lea.hbm %s2, %s971
          %s973 = sshll.u32 %s955, 4
          %s974 = int_to_ptr.vmem [resolvable:$true] %s973
          %979 = dma.vmem_to_hbm [thread:$0]  %s974, 2048, %s972, %s952, 64, 64, 4
        $region48: #{cnn_block_forward.2} parent=27 // pred_fallthru
          _
        // Predicated region
        $region49: #{cnn_block_forward.2} parent=27 // pred_check
          %p980 = pneg %p146
        $region50: #{cnn_block_forward.2} parent=27 // pred_check_branch
          %982 = sbr.rel (%p980) target = $region52
        $region51: #{cnn_block_forward.2} parent=27 // pred_region
          %s984 = ssub.s32 32, 32
          %985 = vsyncadd %s957, %s984
          %s986 = sadd.s32 %s31, %s30
          %s987 = smul.addr %s986, 32
          %s988 = scalar_lea.hbm %s3, %s987
          %s990 = sshll.u32 %s960, 4
          %s991 = int_to_ptr.vmem [resolvable:$true] %s990
          %993 = dma.vmem_to_hbm [thread:$0]  %s991, 32, %s988, %s957
        $region52: #{cnn_block_forward.2} parent=27 // pred_fallthru
          _
      $region28: #{cnn_block_forward.2} parent=5 // pred_fallthru
        _
      %p994 = scmp.le.s32.totalorder 2, %s20
      // Predicated region
      $region53: #{cnn_block_forward.2} parent=5 // pred_check
        %p995 = pneg %p994
      $region54: #{cnn_block_forward.2} parent=5 // pred_check_branch
        %997 = sbr.rel (%p995) target = $region56
      $region55: #{cnn_block_forward.2} parent=5 // pred_region
        %s998 = ssub.s32 %s20, 2
        // Predicated region
        $region57: #{cnn_block_forward.2} parent=55 // pred_check
          %p999 = pneg %p124
        $region58: #{cnn_block_forward.2} parent=55 // pred_check_branch
          %1001 = sbr.rel (%p999) target = $region60
        $region59: #{cnn_block_forward.2} parent=55 // pred_region
          %s1002 = sand.u32 %s109, 1
          %s1003 = scalar_lea.sflag [#allocation5], %s1002
          %s1004 = sand.u32 %s109, 1
          %s1005 = smul.addr %s1004, 128
          %s1006 = scalar_lea.vmem [#allocation8], %s1005
          %1007 = dma.done %s1003, 2048
        $region60: #{cnn_block_forward.2} parent=55 // pred_fallthru
          _
        // Predicated region
        $region61: #{cnn_block_forward.2} parent=55 // pred_check
          %p1008 = pneg %p152
        $region62: #{cnn_block_forward.2} parent=55 // pred_check_branch
          %1010 = sbr.rel (%p1008) target = $region64
        $region63: #{cnn_block_forward.2} parent=55 // pred_region
          %s1011 = sand.u32 %s137, 1
          %s1012 = scalar_lea.sflag [#allocation10], %s1011
          %s1013 = sand.u32 %s137, 1
          %s1014 = smul.addr %s1013, 2
          %s1015 = scalar_lea.vmem [#allocation9], %s1014
          %1016 = dma.done %s1012, 32
        $region64: #{cnn_block_forward.2} parent=55 // pred_fallthru
          _
      $region56: #{cnn_block_forward.2} parent=5 // pred_fallthru
        _
    $region6: #{cnn_block_forward.2} parent=1 // loop_footer
      %s24 = sadd.s32 1, %s20
    $region7: #{cnn_block_forward.2} parent=1 // loop_footer_branch
      %19 = sbr.rel target = $region3
    $region8: #{cnn_block_forward.2} parent=1 // loop_exit
      _
    %1017 = vsyncpa [#allocation4], 1
    %s1018 = scalar_lea.sflag [#allocation4], 1
    %1019 = vsyncpa %s1018, 1
    %1020 = vsyncpa [#allocation7], 1
    %1021 = vsyncpa [#allocation5], 1
    %s1022 = scalar_lea.sflag [#allocation5], 1
    %1023 = vsyncpa %s1022, 1
    %1024 = vsyncpa [#allocation10], 1
    %s1025 = scalar_lea.sflag [#allocation10], 1
    %1026 = vsyncpa %s1025, 1

</llo_original>
